<compile_context>
chip_gen: v6e
topology: v6e:2x2x1
jax: 0.10.0
libtpu: 0.0.40
codegen_flags: <defaults>
</compile_context>

<pallas_src>
import functools

import jax
import jax.numpy as jnp
from jax.experimental import pallas as pl
from jax.experimental.pallas import tpu as pltpu


def _gru_kernel(tok_ref, emb_ref, wih_ref, whh_ref, bih_ref, bhhn_ref,
                wfc_ref, bfc_ref, out_ref, x_ref, *, seq_len, batch_p, hidden):
    """Whole forward pass in one invocation; everything resident in VMEM/SMEM.

    tok_ref  : (S*Bp,)   int32 SMEM  time-major flat token ids (row = t*Bp + b)
    emb_ref  : (Vp, Ep)  f32   VMEM  zero-padded embedding table
    wih_ref  : (Ep, 3H)  bf16  VMEM  W_ih^T (gate order r|z|n), rows >= E zero
    whh_ref  : (H, 3H)   bf16  VMEM  W_hh^T
    bih_ref  : (1, 3H)   f32   VMEM  b_ih with b_hh[r|z] pre-folded in
    bhhn_ref : (1, H)    f32   VMEM  b_hh n-gate slice (must stay inside r*())
    wfc_ref  : (1, H)    f32   VMEM  fc weight as a row vector
    bfc_ref  : (1, 1)    f32   VMEM
    out_ref  : (Bp, 1)   f32   VMEM  sigmoid(fc(h_T))
    x_ref    : (S*Bp, Ep) f32  VMEM scratch for gathered embedding rows
    """
    S, Bp, H = seq_len, batch_p, hidden
    SB = S * Bp

    # ---- Embedding lookup: scalar-indexed row gather (SMEM ids -> VMEM rows).
    # No one-hot, no VPU compare/select, no MXU time spent on a pure gather.
    for i in range(SB):                          # static unroll; SB is small
        tid = tok_ref[i]
        x_ref[pl.ds(i, 1), :] = emb_ref[pl.ds(tid, 1), :]

    # ---- Input projection hoisted out of the recurrence (one tall bf16 matmul)
    x = x_ref[...].astype(jnp.bfloat16)                              # (SB, Ep)
    gi = jnp.dot(x, wih_ref[...],
                 preferred_element_type=jnp.float32) + bih_ref[...]  # (SB, 3H)

    # ---- Sequential GRU recurrence -------------------------------------------
    whh = whh_ref[...]                                               # bf16
    bhh_n = bhhn_ref[...]                                            # (1, H)
    h = jnp.zeros((Bp, H), jnp.float32)
    for t in range(S):                 # static unroll; S is small
        # TODO(synk): for large S, keep gi in a VMEM scratch and switch to
        # lax.fori_loop(..., unroll=True) with pl.ds(pl.multiple_of(t*Bp, 8), Bp)
        # slicing so the unroll does not inflate code size / vreg pressure.
        gi_t = gi[t * Bp:(t + 1) * Bp, :]          # sublane-aligned static slice
        gh = jnp.dot(h.astype(jnp.bfloat16), whh,
                     preferred_element_type=jnp.float32)             # (Bp, 3H)
        r = jax.nn.sigmoid(gi_t[:, :H] + gh[:, :H])
        z = jax.nn.sigmoid(gi_t[:, H:2 * H] + gh[:, H:2 * H])
        n = jnp.tanh(gi_t[:, 2 * H:] + r * (gh[:, 2 * H:] + bhh_n))
        h = n + z * (h - n)            # == (1-z)*n + z*h, one fewer VPU op

    # ---- Final FC (output_dim == 1) as VPU multiply + lane reduction ---------
    logits = jnp.sum(h * wfc_ref[...], axis=-1, keepdims=True) + bfc_ref[...]
    out_ref[...] = jax.nn.sigmoid(logits)


def prepare_params(params):
    """One-time pad / re-layout / bias-fold / bf16 cast of the parameters."""
    emb = params["embedding"]             # (V, E) f32
    w_ih_t = params["w_ih_t"]             # (E, 3H) f32
    w_hh_t = params["w_hh_t"]             # (H, 3H) f32
    b_ih = params["b_ih"]                 # (1, 3H) f32
    b_hh = params["b_hh"]                 # (1, 3H) f32
    V, E = emb.shape
    H3 = w_ih_t.shape[1]
    H = H3 // 3
    Ep = ((E + 127) // 128) * 128         # lane-align the embedding dim
    Vp = ((V + 7) // 8) * 8               # sublane-align the vocab dim

    emb_p = jnp.zeros((Vp, Ep), jnp.float32).at[:V, :E].set(emb)
    wih_p = jnp.zeros((Ep, H3), jnp.float32).at[:E, :].set(w_ih_t)

    # Fold b_hh[r|z] into b_ih (they commute outside the r-multiply); the
    # n-gate slice of b_hh must stay inside r*(...) per PyTorch GRU semantics.
    b_ih_fused = b_ih.at[:, :2 * H].add(b_hh[:, :2 * H])
    b_hh_n = b_hh[:, 2 * H:]

    return dict(
        embedding=emb_p,                           # f32 (exact gather source)
        w_ih_t=wih_p.astype(jnp.bfloat16),         # bf16 MXU operand
        w_hh_t=w_hh_t.astype(jnp.bfloat16),        # bf16 MXU operand
        b_ih_fused=b_ih_fused,
        b_hh_n=b_hh_n,
        w_fc_row=jnp.transpose(params["w_fc_t"]),  # (1, H)
        b_fc=params["b_fc"],                       # (1, 1)
    )


def sentiment_gru_forward(tokens, kparams):
    """tokens: (B, S) int32 token ids. Returns (B, 1) f32 probabilities."""
    B, S = tokens.shape
    H = kparams["w_hh_t"].shape[0]
    Ep = kparams["embedding"].shape[1]
    Bp = ((B + 7) // 8) * 8          # pad batch to a sublane multiple
    SB = S * Bp

    # Tiny int32 glue only: pad batch rows (token 0) and flatten time-major.
    tok_p = jnp.zeros((Bp, S), jnp.int32).at[:B, :].set(tokens)
    tok_flat = jnp.transpose(tok_p).reshape(SB)    # row = t*Bp + b

    kernel = functools.partial(_gru_kernel, seq_len=S, batch_p=Bp, hidden=H)
    smem = pltpu.MemorySpace.SMEM
    vmem = pltpu.MemorySpace.VMEM
    out_p = pl.pallas_call(
        kernel,
        out_shape=jax.ShapeDtypeStruct((Bp, 1), jnp.float32),
        in_specs=[pl.BlockSpec(memory_space=smem)]       # token ids -> SMEM
        + [pl.BlockSpec(memory_space=vmem)] * 7,         # params -> VMEM
        out_specs=pl.BlockSpec(memory_space=vmem),
        scratch_shapes=[pltpu.VMEM((SB, Ep), jnp.float32)],
    )(tok_flat, kparams["embedding"], kparams["w_ih_t"], kparams["w_hh_t"],
      kparams["b_ih_fused"], kparams["b_hh_n"], kparams["w_fc_row"],
      kparams["b_fc"])
    return out_p[:B]


def init_params(key, vocab_size, embedding_dim, hidden_dim, output_dim):
    """Deterministic synthetic parameter init (PyTorch-like uniform ranges)."""
    keys = jax.random.split(key, 7)
    k = 1.0 / jnp.sqrt(hidden_dim)

    embedding = jax.random.normal(keys[0], (vocab_size, embedding_dim),
                                  dtype=jnp.float32)
    # nn.GRU stores weight_ih_l0 as (3H, E); we keep the transposed layout.
    w_ih_t = jax.random.uniform(keys[1], (embedding_dim, 3 * hidden_dim),
                                minval=-k, maxval=k, dtype=jnp.float32)
    w_hh_t = jax.random.uniform(keys[2], (hidden_dim, 3 * hidden_dim),
                                minval=-k, maxval=k, dtype=jnp.float32)
    b_ih = jax.random.uniform(keys[3], (1, 3 * hidden_dim),
                              minval=-k, maxval=k, dtype=jnp.float32)
    b_hh = jax.random.uniform(keys[4], (1, 3 * hidden_dim),
                              minval=-k, maxval=k, dtype=jnp.float32)
    kf = 1.0 / jnp.sqrt(hidden_dim)
    w_fc_t = jax.random.uniform(keys[5], (hidden_dim, output_dim),
                                minval=-kf, maxval=kf, dtype=jnp.float32)
    b_fc = jax.random.uniform(keys[6], (1, output_dim),
                              minval=-kf, maxval=kf, dtype=jnp.float32)
    return dict(embedding=embedding, w_ih_t=w_ih_t, w_hh_t=w_hh_t,
                b_ih=b_ih, b_hh=b_hh, w_fc_t=w_fc_t, b_fc=b_fc)


def reference_forward(tokens, params):
    """Pure-JAX f32 reference of the same forward pass (for sanity check)."""
    emb = jnp.take(params["embedding"], tokens, axis=0)   # (B, S, E)
    B, S, E = emb.shape
    H = params["w_hh_t"].shape[0]
    h = jnp.zeros((B, H), jnp.float32)
    for t in range(S):
        x_t = emb[:, t, :]
        gi = x_t @ params["w_ih_t"] + params["b_ih"]
        gh = h @ params["w_hh_t"] + params["b_hh"]
        r = jax.nn.sigmoid(gi[:, :H] + gh[:, :H])
        z = jax.nn.sigmoid(gi[:, H:2 * H] + gh[:, H:2 * H])
        n = jnp.tanh(gi[:, 2 * H:] + r * gh[:, 2 * H:])
        h = (1.0 - z) * n + z * h
    return jax.nn.sigmoid(h @ params["w_fc_t"] + params["b_fc"])


if __name__ == "__main__":
    vocab_size = 50
    embedding_dim = 100
    hidden_dim = 128
    output_dim = 1
    batch, seq = 2, 8

    key = jax.random.PRNGKey(0)
    k_params, k_tok = jax.random.split(key)
    params = init_params(k_params, vocab_size, embedding_dim, hidden_dim,
                         output_dim)
    tokens = jax.random.randint(k_tok, (batch, seq), 0, vocab_size,
                                dtype=jnp.int32)

    kparams = prepare_params(params)   # one-time padded / fused / bf16 layout
    out = jax.block_until_ready(sentiment_gru_forward(tokens, kparams))

    ref = jax.block_until_ready(reference_forward(tokens, params))
    assert out.shape == (batch, output_dim)
    # bf16 MXU operands with f32 accumulation: small, bounded deviation from
    # the pure-f32 reference is expected.
    assert jnp.allclose(out, ref, atol=2e-2, rtol=2e-2), (out, ref)

    print("KERNEL_OK")
</pallas_src>

<mosaic_0001>
module attributes {stable_mosaic.version = 11 : i64} {
  func.func @_gru_kernel(%arg0: memref<64xi32, #tpu.memory_space<smem>>, %arg1: memref<56x128xf32, #tpu.memory_space<vmem>>, %arg2: memref<128x384xbf16, #tpu.memory_space<vmem>>, %arg3: memref<128x384xbf16, #tpu.memory_space<vmem>>, %arg4: memref<1x384xf32, #tpu.memory_space<vmem>>, %arg5: memref<1x128xf32, #tpu.memory_space<vmem>>, %arg6: memref<1x128xf32, #tpu.memory_space<vmem>>, %arg7: memref<1x1xf32, #tpu.memory_space<vmem>>, %arg8: memref<8x1xf32, #tpu.memory_space<vmem>>, %arg9: memref<64x128xf32, #tpu.memory_space<vmem>>) attributes {dimension_semantics = [], scalar_prefetch = 0 : i64, scratch_operands = 1 : i64, tpu.core_type = #tpu.core_type<tc>} {
    %c0 = arith.constant 0 : index
    %0 = memref.load %arg0[%c0] : memref<64xi32, #tpu.memory_space<smem>>
    %1 = arith.index_cast %0 : i32 to index
    %c0_0 = arith.constant 0 : index
    %2 = vector.load %arg1[%1, %c0_0] : memref<56x128xf32, #tpu.memory_space<vmem>>, vector<1x128xf32>
    %c0_1 = arith.constant 0 : index
    %c0_2 = arith.constant 0 : index
    %3 = vector.load %arg9[%c0_1, %c0_2] : memref<64x128xf32, #tpu.memory_space<vmem>>, vector<1x128xf32>
    tpu.vector_store %arg9[%c0_1, %c0_2], %2 {strides = array<i32>} : memref<64x128xf32, #tpu.memory_space<vmem>>, vector<1x128xf32>,
    %c1 = arith.constant 1 : index
    %4 = memref.load %arg0[%c1] : memref<64xi32, #tpu.memory_space<smem>>
    %5 = arith.index_cast %4 : i32 to index
    %c0_3 = arith.constant 0 : index
    %6 = vector.load %arg1[%5, %c0_3] : memref<56x128xf32, #tpu.memory_space<vmem>>, vector<1x128xf32>
    %c1_4 = arith.constant 1 : index
    %c0_5 = arith.constant 0 : index
    %7 = vector.load %arg9[%c1_4, %c0_5] : memref<64x128xf32, #tpu.memory_space<vmem>>, vector<1x128xf32>
    tpu.vector_store %arg9[%c1_4, %c0_5], %6 {strides = array<i32>} : memref<64x128xf32, #tpu.memory_space<vmem>>, vector<1x128xf32>,
    %c2 = arith.constant 2 : index
    %8 = memref.load %arg0[%c2] : memref<64xi32, #tpu.memory_space<smem>>
    %9 = arith.index_cast %8 : i32 to index
    %c0_6 = arith.constant 0 : index
    %10 = vector.load %arg1[%9, %c0_6] : memref<56x128xf32, #tpu.memory_space<vmem>>, vector<1x128xf32>
    %c2_7 = arith.constant 2 : index
    %c0_8 = arith.constant 0 : index
    %11 = vector.load %arg9[%c2_7, %c0_8] : memref<64x128xf32, #tpu.memory_space<vmem>>, vector<1x128xf32>
    tpu.vector_store %arg9[%c2_7, %c0_8], %10 {strides = array<i32>} : memref<64x128xf32, #tpu.memory_space<vmem>>, vector<1x128xf32>,
    %c3 = arith.constant 3 : index
    %12 = memref.load %arg0[%c3] : memref<64xi32, #tpu.memory_space<smem>>
    %13 = arith.index_cast %12 : i32 to index
    %c0_9 = arith.constant 0 : index
    %14 = vector.load %arg1[%13, %c0_9] : memref<56x128xf32, #tpu.memory_space<vmem>>, vector<1x128xf32>
    %c3_10 = arith.constant 3 : index
    %c0_11 = arith.constant 0 : index
    %15 = vector.load %arg9[%c3_10, %c0_11] : memref<64x128xf32, #tpu.memory_space<vmem>>, vector<1x128xf32>
    tpu.vector_store %arg9[%c3_10, %c0_11], %14 {strides = array<i32>} : memref<64x128xf32, #tpu.memory_space<vmem>>, vector<1x128xf32>,
    %c4 = arith.constant 4 : index
    %16 = memref.load %arg0[%c4] : memref<64xi32, #tpu.memory_space<smem>>
    %17 = arith.index_cast %16 : i32 to index
    %c0_12 = arith.constant 0 : index
    %18 = vector.load %arg1[%17, %c0_12] : memref<56x128xf32, #tpu.memory_space<vmem>>, vector<1x128xf32>
    %c4_13 = arith.constant 4 : index
    %c0_14 = arith.constant 0 : index
    %19 = vector.load %arg9[%c4_13, %c0_14] : memref<64x128xf32, #tpu.memory_space<vmem>>, vector<1x128xf32>
    tpu.vector_store %arg9[%c4_13, %c0_14], %18 {strides = array<i32>} : memref<64x128xf32, #tpu.memory_space<vmem>>, vector<1x128xf32>,
    %c5 = arith.constant 5 : index
    %20 = memref.load %arg0[%c5] : memref<64xi32, #tpu.memory_space<smem>>
    %21 = arith.index_cast %20 : i32 to index
    %c0_15 = arith.constant 0 : index
    %22 = vector.load %arg1[%21, %c0_15] : memref<56x128xf32, #tpu.memory_space<vmem>>, vector<1x128xf32>
    %c5_16 = arith.constant 5 : index
    %c0_17 = arith.constant 0 : index
    %23 = vector.load %arg9[%c5_16, %c0_17] : memref<64x128xf32, #tpu.memory_space<vmem>>, vector<1x128xf32>
    tpu.vector_store %arg9[%c5_16, %c0_17], %22 {strides = array<i32>} : memref<64x128xf32, #tpu.memory_space<vmem>>, vector<1x128xf32>,
    %c6 = arith.constant 6 : index
    %24 = memref.load %arg0[%c6] : memref<64xi32, #tpu.memory_space<smem>>
    %25 = arith.index_cast %24 : i32 to index
    %c0_18 = arith.constant 0 : index
    %26 = vector.load %arg1[%25, %c0_18] : memref<56x128xf32, #tpu.memory_space<vmem>>, vector<1x128xf32>
    %c6_19 = arith.constant 6 : index
    %c0_20 = arith.constant 0 : index
    %27 = vector.load %arg9[%c6_19, %c0_20] : memref<64x128xf32, #tpu.memory_space<vmem>>, vector<1x128xf32>
    tpu.vector_store %arg9[%c6_19, %c0_20], %26 {strides = array<i32>} : memref<64x128xf32, #tpu.memory_space<vmem>>, vector<1x128xf32>,
    %c7 = arith.constant 7 : index
    %28 = memref.load %arg0[%c7] : memref<64xi32, #tpu.memory_space<smem>>
    %29 = arith.index_cast %28 : i32 to index
    %c0_21 = arith.constant 0 : index
    %30 = vector.load %arg1[%29, %c0_21] : memref<56x128xf32, #tpu.memory_space<vmem>>, vector<1x128xf32>
    %c7_22 = arith.constant 7 : index
    %c0_23 = arith.constant 0 : index
    %31 = vector.load %arg9[%c7_22, %c0_23] : memref<64x128xf32, #tpu.memory_space<vmem>>, vector<1x128xf32>
    tpu.vector_store %arg9[%c7_22, %c0_23], %30 {strides = array<i32>} : memref<64x128xf32, #tpu.memory_space<vmem>>, vector<1x128xf32>,
    %c8 = arith.constant 8 : index
    %32 = memref.load %arg0[%c8] : memref<64xi32, #tpu.memory_space<smem>>
    %33 = arith.index_cast %32 : i32 to index
    %c0_24 = arith.constant 0 : index
    %34 = vector.load %arg1[%33, %c0_24] : memref<56x128xf32, #tpu.memory_space<vmem>>, vector<1x128xf32>
    %c8_25 = arith.constant 8 : index
    %c0_26 = arith.constant 0 : index
    %35 = vector.load %arg9[%c8_25, %c0_26] : memref<64x128xf32, #tpu.memory_space<vmem>>, vector<1x128xf32>
    tpu.vector_store %arg9[%c8_25, %c0_26], %34 {strides = array<i32>} : memref<64x128xf32, #tpu.memory_space<vmem>>, vector<1x128xf32>,
    %c9 = arith.constant 9 : index
    %36 = memref.load %arg0[%c9] : memref<64xi32, #tpu.memory_space<smem>>
    %37 = arith.index_cast %36 : i32 to index
    %c0_27 = arith.constant 0 : index
    %38 = vector.load %arg1[%37, %c0_27] : memref<56x128xf32, #tpu.memory_space<vmem>>, vector<1x128xf32>
    %c9_28 = arith.constant 9 : index
    %c0_29 = arith.constant 0 : index
    %39 = vector.load %arg9[%c9_28, %c0_29] : memref<64x128xf32, #tpu.memory_space<vmem>>, vector<1x128xf32>
    tpu.vector_store %arg9[%c9_28, %c0_29], %38 {strides = array<i32>} : memref<64x128xf32, #tpu.memory_space<vmem>>, vector<1x128xf32>,
    %c10 = arith.constant 10 : index
    %40 = memref.load %arg0[%c10] : memref<64xi32, #tpu.memory_space<smem>>
    %41 = arith.index_cast %40 : i32 to index
    %c0_30 = arith.constant 0 : index
    %42 = vector.load %arg1[%41, %c0_30] : memref<56x128xf32, #tpu.memory_space<vmem>>, vector<1x128xf32>
    %c10_31 = arith.constant 10 : index
    %c0_32 = arith.constant 0 : index
    %43 = vector.load %arg9[%c10_31, %c0_32] : memref<64x128xf32, #tpu.memory_space<vmem>>, vector<1x128xf32>
    tpu.vector_store %arg9[%c10_31, %c0_32], %42 {strides = array<i32>} : memref<64x128xf32, #tpu.memory_space<vmem>>, vector<1x128xf32>,
    %c11 = arith.constant 11 : index
    %44 = memref.load %arg0[%c11] : memref<64xi32, #tpu.memory_space<smem>>
    %45 = arith.index_cast %44 : i32 to index
    %c0_33 = arith.constant 0 : index
    %46 = vector.load %arg1[%45, %c0_33] : memref<56x128xf32, #tpu.memory_space<vmem>>, vector<1x128xf32>
    %c11_34 = arith.constant 11 : index
    %c0_35 = arith.constant 0 : index
    %47 = vector.load %arg9[%c11_34, %c0_35] : memref<64x128xf32, #tpu.memory_space<vmem>>, vector<1x128xf32>
    tpu.vector_store %arg9[%c11_34, %c0_35], %46 {strides = array<i32>} : memref<64x128xf32, #tpu.memory_space<vmem>>, vector<1x128xf32>,
    %c12 = arith.constant 12 : index
    %48 = memref.load %arg0[%c12] : memref<64xi32, #tpu.memory_space<smem>>
    %49 = arith.index_cast %48 : i32 to index
    %c0_36 = arith.constant 0 : index
    %50 = vector.load %arg1[%49, %c0_36] : memref<56x128xf32, #tpu.memory_space<vmem>>, vector<1x128xf32>
    %c12_37 = arith.constant 12 : index
    %c0_38 = arith.constant 0 : index
    %51 = vector.load %arg9[%c12_37, %c0_38] : memref<64x128xf32, #tpu.memory_space<vmem>>, vector<1x128xf32>
    tpu.vector_store %arg9[%c12_37, %c0_38], %50 {strides = array<i32>} : memref<64x128xf32, #tpu.memory_space<vmem>>, vector<1x128xf32>,
    %c13 = arith.constant 13 : index
    %52 = memref.load %arg0[%c13] : memref<64xi32, #tpu.memory_space<smem>>
    %53 = arith.index_cast %52 : i32 to index
    %c0_39 = arith.constant 0 : index
    %54 = vector.load %arg1[%53, %c0_39] : memref<56x128xf32, #tpu.memory_space<vmem>>, vector<1x128xf32>
    %c13_40 = arith.constant 13 : index
    %c0_41 = arith.constant 0 : index
    %55 = vector.load %arg9[%c13_40, %c0_41] : memref<64x128xf32, #tpu.memory_space<vmem>>, vector<1x128xf32>
    tpu.vector_store %arg9[%c13_40, %c0_41], %54 {strides = array<i32>} : memref<64x128xf32, #tpu.memory_space<vmem>>, vector<1x128xf32>,
    %c14 = arith.constant 14 : index
    %56 = memref.load %arg0[%c14] : memref<64xi32, #tpu.memory_space<smem>>
    %57 = arith.index_cast %56 : i32 to index
    %c0_42 = arith.constant 0 : index
    %58 = vector.load %arg1[%57, %c0_42] : memref<56x128xf32, #tpu.memory_space<vmem>>, vector<1x128xf32>
    %c14_43 = arith.constant 14 : index
    %c0_44 = arith.constant 0 : index
    %59 = vector.load %arg9[%c14_43, %c0_44] : memref<64x128xf32, #tpu.memory_space<vmem>>, vector<1x128xf32>
    tpu.vector_store %arg9[%c14_43, %c0_44], %58 {strides = array<i32>} : memref<64x128xf32, #tpu.memory_space<vmem>>, vector<1x128xf32>,
    %c15 = arith.constant 15 : index
    %60 = memref.load %arg0[%c15] : memref<64xi32, #tpu.memory_space<smem>>
    %61 = arith.index_cast %60 : i32 to index
    %c0_45 = arith.constant 0 : index
    %62 = vector.load %arg1[%61, %c0_45] : memref<56x128xf32, #tpu.memory_space<vmem>>, vector<1x128xf32>
    %c15_46 = arith.constant 15 : index
    %c0_47 = arith.constant 0 : index
    %63 = vector.load %arg9[%c15_46, %c0_47] : memref<64x128xf32, #tpu.memory_space<vmem>>, vector<1x128xf32>
    tpu.vector_store %arg9[%c15_46, %c0_47], %62 {strides = array<i32>} : memref<64x128xf32, #tpu.memory_space<vmem>>, vector<1x128xf32>,
    %c16 = arith.constant 16 : index
    %64 = memref.load %arg0[%c16] : memref<64xi32, #tpu.memory_space<smem>>
    %65 = arith.index_cast %64 : i32 to index
    %c0_48 = arith.constant 0 : index
    %66 = vector.load %arg1[%65, %c0_48] : memref<56x128xf32, #tpu.memory_space<vmem>>, vector<1x128xf32>
    %c16_49 = arith.constant 16 : index
    %c0_50 = arith.constant 0 : index
    %67 = vector.load %arg9[%c16_49, %c0_50] : memref<64x128xf32, #tpu.memory_space<vmem>>, vector<1x128xf32>
    tpu.vector_store %arg9[%c16_49, %c0_50], %66 {strides = array<i32>} : memref<64x128xf32, #tpu.memory_space<vmem>>, vector<1x128xf32>,
    %c17 = arith.constant 17 : index
    %68 = memref.load %arg0[%c17] : memref<64xi32, #tpu.memory_space<smem>>
    %69 = arith.index_cast %68 : i32 to index
    %c0_51 = arith.constant 0 : index
    %70 = vector.load %arg1[%69, %c0_51] : memref<56x128xf32, #tpu.memory_space<vmem>>, vector<1x128xf32>
    %c17_52 = arith.constant 17 : index
    %c0_53 = arith.constant 0 : index
    %71 = vector.load %arg9[%c17_52, %c0_53] : memref<64x128xf32, #tpu.memory_space<vmem>>, vector<1x128xf32>
    tpu.vector_store %arg9[%c17_52, %c0_53], %70 {strides = array<i32>} : memref<64x128xf32, #tpu.memory_space<vmem>>, vector<1x128xf32>,
    %c18 = arith.constant 18 : index
    %72 = memref.load %arg0[%c18] : memref<64xi32, #tpu.memory_space<smem>>
    %73 = arith.index_cast %72 : i32 to index
    %c0_54 = arith.constant 0 : index
    %74 = vector.load %arg1[%73, %c0_54] : memref<56x128xf32, #tpu.memory_space<vmem>>, vector<1x128xf32>
    %c18_55 = arith.constant 18 : index
    %c0_56 = arith.constant 0 : index
    %75 = vector.load %arg9[%c18_55, %c0_56] : memref<64x128xf32, #tpu.memory_space<vmem>>, vector<1x128xf32>
    tpu.vector_store %arg9[%c18_55, %c0_56], %74 {strides = array<i32>} : memref<64x128xf32, #tpu.memory_space<vmem>>, vector<1x128xf32>,
    %c19 = arith.constant 19 : index
    %76 = memref.load %arg0[%c19] : memref<64xi32, #tpu.memory_space<smem>>
    %77 = arith.index_cast %76 : i32 to index
    %c0_57 = arith.constant 0 : index
    %78 = vector.load %arg1[%77, %c0_57] : memref<56x128xf32, #tpu.memory_space<vmem>>, vector<1x128xf32>
    %c19_58 = arith.constant 19 : index
    %c0_59 = arith.constant 0 : index
    %79 = vector.load %arg9[%c19_58, %c0_59] : memref<64x128xf32, #tpu.memory_space<vmem>>, vector<1x128xf32>
    tpu.vector_store %arg9[%c19_58, %c0_59], %78 {strides = array<i32>} : memref<64x128xf32, #tpu.memory_space<vmem>>, vector<1x128xf32>,
    %c20 = arith.constant 20 : index
    %80 = memref.load %arg0[%c20] : memref<64xi32, #tpu.memory_space<smem>>
    %81 = arith.index_cast %80 : i32 to index
    %c0_60 = arith.constant 0 : index
    %82 = vector.load %arg1[%81, %c0_60] : memref<56x128xf32, #tpu.memory_space<vmem>>, vector<1x128xf32>
    %c20_61 = arith.constant 20 : index
    %c0_62 = arith.constant 0 : index
    %83 = vector.load %arg9[%c20_61, %c0_62] : memref<64x128xf32, #tpu.memory_space<vmem>>, vector<1x128xf32>
    tpu.vector_store %arg9[%c20_61, %c0_62], %82 {strides = array<i32>} : memref<64x128xf32, #tpu.memory_space<vmem>>, vector<1x128xf32>,
    %c21 = arith.constant 21 : index
    %84 = memref.load %arg0[%c21] : memref<64xi32, #tpu.memory_space<smem>>
    %85 = arith.index_cast %84 : i32 to index
    %c0_63 = arith.constant 0 : index
    %86 = vector.load %arg1[%85, %c0_63] : memref<56x128xf32, #tpu.memory_space<vmem>>, vector<1x128xf32>
    %c21_64 = arith.constant 21 : index
    %c0_65 = arith.constant 0 : index
    %87 = vector.load %arg9[%c21_64, %c0_65] : memref<64x128xf32, #tpu.memory_space<vmem>>, vector<1x128xf32>
    tpu.vector_store %arg9[%c21_64, %c0_65], %86 {strides = array<i32>} : memref<64x128xf32, #tpu.memory_space<vmem>>, vector<1x128xf32>,
    %c22 = arith.constant 22 : index
    %88 = memref.load %arg0[%c22] : memref<64xi32, #tpu.memory_space<smem>>
    %89 = arith.index_cast %88 : i32 to index
    %c0_66 = arith.constant 0 : index
    %90 = vector.load %arg1[%89, %c0_66] : memref<56x128xf32, #tpu.memory_space<vmem>>, vector<1x128xf32>
    %c22_67 = arith.constant 22 : index
    %c0_68 = arith.constant 0 : index
    %91 = vector.load %arg9[%c22_67, %c0_68] : memref<64x128xf32, #tpu.memory_space<vmem>>, vector<1x128xf32>
    tpu.vector_store %arg9[%c22_67, %c0_68], %90 {strides = array<i32>} : memref<64x128xf32, #tpu.memory_space<vmem>>, vector<1x128xf32>,
    %c23 = arith.constant 23 : index
    %92 = memref.load %arg0[%c23] : memref<64xi32, #tpu.memory_space<smem>>
    %93 = arith.index_cast %92 : i32 to index
    %c0_69 = arith.constant 0 : index
    %94 = vector.load %arg1[%93, %c0_69] : memref<56x128xf32, #tpu.memory_space<vmem>>, vector<1x128xf32>
    %c23_70 = arith.constant 23 : index
    %c0_71 = arith.constant 0 : index
    %95 = vector.load %arg9[%c23_70, %c0_71] : memref<64x128xf32, #tpu.memory_space<vmem>>, vector<1x128xf32>
    tpu.vector_store %arg9[%c23_70, %c0_71], %94 {strides = array<i32>} : memref<64x128xf32, #tpu.memory_space<vmem>>, vector<1x128xf32>,
    %c24 = arith.constant 24 : index
    %96 = memref.load %arg0[%c24] : memref<64xi32, #tpu.memory_space<smem>>
    %97 = arith.index_cast %96 : i32 to index
    %c0_72 = arith.constant 0 : index
    %98 = vector.load %arg1[%97, %c0_72] : memref<56x128xf32, #tpu.memory_space<vmem>>, vector<1x128xf32>
    %c24_73 = arith.constant 24 : index
    %c0_74 = arith.constant 0 : index
    %99 = vector.load %arg9[%c24_73, %c0_74] : memref<64x128xf32, #tpu.memory_space<vmem>>, vector<1x128xf32>
    tpu.vector_store %arg9[%c24_73, %c0_74], %98 {strides = array<i32>} : memref<64x128xf32, #tpu.memory_space<vmem>>, vector<1x128xf32>,
    %c25 = arith.constant 25 : index
    %100 = memref.load %arg0[%c25] : memref<64xi32, #tpu.memory_space<smem>>
    %101 = arith.index_cast %100 : i32 to index
    %c0_75 = arith.constant 0 : index
    %102 = vector.load %arg1[%101, %c0_75] : memref<56x128xf32, #tpu.memory_space<vmem>>, vector<1x128xf32>
    %c25_76 = arith.constant 25 : index
    %c0_77 = arith.constant 0 : index
    %103 = vector.load %arg9[%c25_76, %c0_77] : memref<64x128xf32, #tpu.memory_space<vmem>>, vector<1x128xf32>
    tpu.vector_store %arg9[%c25_76, %c0_77], %102 {strides = array<i32>} : memref<64x128xf32, #tpu.memory_space<vmem>>, vector<1x128xf32>,
    %c26 = arith.constant 26 : index
    %104 = memref.load %arg0[%c26] : memref<64xi32, #tpu.memory_space<smem>>
    %105 = arith.index_cast %104 : i32 to index
    %c0_78 = arith.constant 0 : index
    %106 = vector.load %arg1[%105, %c0_78] : memref<56x128xf32, #tpu.memory_space<vmem>>, vector<1x128xf32>
    %c26_79 = arith.constant 26 : index
    %c0_80 = arith.constant 0 : index
    %107 = vector.load %arg9[%c26_79, %c0_80] : memref<64x128xf32, #tpu.memory_space<vmem>>, vector<1x128xf32>
    tpu.vector_store %arg9[%c26_79, %c0_80], %106 {strides = array<i32>} : memref<64x128xf32, #tpu.memory_space<vmem>>, vector<1x128xf32>,
    %c27 = arith.constant 27 : index
    %108 = memref.load %arg0[%c27] : memref<64xi32, #tpu.memory_space<smem>>
    %109 = arith.index_cast %108 : i32 to index
    %c0_81 = arith.constant 0 : index
    %110 = vector.load %arg1[%109, %c0_81] : memref<56x128xf32, #tpu.memory_space<vmem>>, vector<1x128xf32>
    %c27_82 = arith.constant 27 : index
    %c0_83 = arith.constant 0 : index
    %111 = vector.load %arg9[%c27_82, %c0_83] : memref<64x128xf32, #tpu.memory_space<vmem>>, vector<1x128xf32>
    tpu.vector_store %arg9[%c27_82, %c0_83], %110 {strides = array<i32>} : memref<64x128xf32, #tpu.memory_space<vmem>>, vector<1x128xf32>,
    %c28 = arith.constant 28 : index
    %112 = memref.load %arg0[%c28] : memref<64xi32, #tpu.memory_space<smem>>
    %113 = arith.index_cast %112 : i32 to index
    %c0_84 = arith.constant 0 : index
    %114 = vector.load %arg1[%113, %c0_84] : memref<56x128xf32, #tpu.memory_space<vmem>>, vector<1x128xf32>
    %c28_85 = arith.constant 28 : index
    %c0_86 = arith.constant 0 : index
    %115 = vector.load %arg9[%c28_85, %c0_86] : memref<64x128xf32, #tpu.memory_space<vmem>>, vector<1x128xf32>
    tpu.vector_store %arg9[%c28_85, %c0_86], %114 {strides = array<i32>} : memref<64x128xf32, #tpu.memory_space<vmem>>, vector<1x128xf32>,
    %c29 = arith.constant 29 : index
    %116 = memref.load %arg0[%c29] : memref<64xi32, #tpu.memory_space<smem>>
    %117 = arith.index_cast %116 : i32 to index
    %c0_87 = arith.constant 0 : index
    %118 = vector.load %arg1[%117, %c0_87] : memref<56x128xf32, #tpu.memory_space<vmem>>, vector<1x128xf32>
    %c29_88 = arith.constant 29 : index
    %c0_89 = arith.constant 0 : index
    %119 = vector.load %arg9[%c29_88, %c0_89] : memref<64x128xf32, #tpu.memory_space<vmem>>, vector<1x128xf32>
    tpu.vector_store %arg9[%c29_88, %c0_89], %118 {strides = array<i32>} : memref<64x128xf32, #tpu.memory_space<vmem>>, vector<1x128xf32>,
    %c30 = arith.constant 30 : index
    %120 = memref.load %arg0[%c30] : memref<64xi32, #tpu.memory_space<smem>>
    %121 = arith.index_cast %120 : i32 to index
    %c0_90 = arith.constant 0 : index
    %122 = vector.load %arg1[%121, %c0_90] : memref<56x128xf32, #tpu.memory_space<vmem>>, vector<1x128xf32>
    %c30_91 = arith.constant 30 : index
    %c0_92 = arith.constant 0 : index
    %123 = vector.load %arg9[%c30_91, %c0_92] : memref<64x128xf32, #tpu.memory_space<vmem>>, vector<1x128xf32>
    tpu.vector_store %arg9[%c30_91, %c0_92], %122 {strides = array<i32>} : memref<64x128xf32, #tpu.memory_space<vmem>>, vector<1x128xf32>,
    %c31 = arith.constant 31 : index
    %124 = memref.load %arg0[%c31] : memref<64xi32, #tpu.memory_space<smem>>
    %125 = arith.index_cast %124 : i32 to index
    %c0_93 = arith.constant 0 : index
    %126 = vector.load %arg1[%125, %c0_93] : memref<56x128xf32, #tpu.memory_space<vmem>>, vector<1x128xf32>
    %c31_94 = arith.constant 31 : index
    %c0_95 = arith.constant 0 : index
    %127 = vector.load %arg9[%c31_94, %c0_95] : memref<64x128xf32, #tpu.memory_space<vmem>>, vector<1x128xf32>
    tpu.vector_store %arg9[%c31_94, %c0_95], %126 {strides = array<i32>} : memref<64x128xf32, #tpu.memory_space<vmem>>, vector<1x128xf32>,
    %c32 = arith.constant 32 : index
    %128 = memref.load %arg0[%c32] : memref<64xi32, #tpu.memory_space<smem>>
    %129 = arith.index_cast %128 : i32 to index
    %c0_96 = arith.constant 0 : index
    %130 = vector.load %arg1[%129, %c0_96] : memref<56x128xf32, #tpu.memory_space<vmem>>, vector<1x128xf32>
    %c32_97 = arith.constant 32 : index
    %c0_98 = arith.constant 0 : index
    %131 = vector.load %arg9[%c32_97, %c0_98] : memref<64x128xf32, #tpu.memory_space<vmem>>, vector<1x128xf32>
    tpu.vector_store %arg9[%c32_97, %c0_98], %130 {strides = array<i32>} : memref<64x128xf32, #tpu.memory_space<vmem>>, vector<1x128xf32>,
    %c33 = arith.constant 33 : index
    %132 = memref.load %arg0[%c33] : memref<64xi32, #tpu.memory_space<smem>>
    %133 = arith.index_cast %132 : i32 to index
    %c0_99 = arith.constant 0 : index
    %134 = vector.load %arg1[%133, %c0_99] : memref<56x128xf32, #tpu.memory_space<vmem>>, vector<1x128xf32>
    %c33_100 = arith.constant 33 : index
    %c0_101 = arith.constant 0 : index
    %135 = vector.load %arg9[%c33_100, %c0_101] : memref<64x128xf32, #tpu.memory_space<vmem>>, vector<1x128xf32>
    tpu.vector_store %arg9[%c33_100, %c0_101], %134 {strides = array<i32>} : memref<64x128xf32, #tpu.memory_space<vmem>>, vector<1x128xf32>,
    %c34 = arith.constant 34 : index
    %136 = memref.load %arg0[%c34] : memref<64xi32, #tpu.memory_space<smem>>
    %137 = arith.index_cast %136 : i32 to index
    %c0_102 = arith.constant 0 : index
    %138 = vector.load %arg1[%137, %c0_102] : memref<56x128xf32, #tpu.memory_space<vmem>>, vector<1x128xf32>
    %c34_103 = arith.constant 34 : index
    %c0_104 = arith.constant 0 : index
    %139 = vector.load %arg9[%c34_103, %c0_104] : memref<64x128xf32, #tpu.memory_space<vmem>>, vector<1x128xf32>
    tpu.vector_store %arg9[%c34_103, %c0_104], %138 {strides = array<i32>} : memref<64x128xf32, #tpu.memory_space<vmem>>, vector<1x128xf32>,
    %c35 = arith.constant 35 : index
    %140 = memref.load %arg0[%c35] : memref<64xi32, #tpu.memory_space<smem>>
    %141 = arith.index_cast %140 : i32 to index
    %c0_105 = arith.constant 0 : index
    %142 = vector.load %arg1[%141, %c0_105] : memref<56x128xf32, #tpu.memory_space<vmem>>, vector<1x128xf32>
    %c35_106 = arith.constant 35 : index
    %c0_107 = arith.constant 0 : index
    %143 = vector.load %arg9[%c35_106, %c0_107] : memref<64x128xf32, #tpu.memory_space<vmem>>, vector<1x128xf32>
    tpu.vector_store %arg9[%c35_106, %c0_107], %142 {strides = array<i32>} : memref<64x128xf32, #tpu.memory_space<vmem>>, vector<1x128xf32>,
    %c36 = arith.constant 36 : index
    %144 = memref.load %arg0[%c36] : memref<64xi32, #tpu.memory_space<smem>>
    %145 = arith.index_cast %144 : i32 to index
    %c0_108 = arith.constant 0 : index
    %146 = vector.load %arg1[%145, %c0_108] : memref<56x128xf32, #tpu.memory_space<vmem>>, vector<1x128xf32>
    %c36_109 = arith.constant 36 : index
    %c0_110 = arith.constant 0 : index
    %147 = vector.load %arg9[%c36_109, %c0_110] : memref<64x128xf32, #tpu.memory_space<vmem>>, vector<1x128xf32>
    tpu.vector_store %arg9[%c36_109, %c0_110], %146 {strides = array<i32>} : memref<64x128xf32, #tpu.memory_space<vmem>>, vector<1x128xf32>,
    %c37 = arith.constant 37 : index
    %148 = memref.load %arg0[%c37] : memref<64xi32, #tpu.memory_space<smem>>
    %149 = arith.index_cast %148 : i32 to index
    %c0_111 = arith.constant 0 : index
    %150 = vector.load %arg1[%149, %c0_111] : memref<56x128xf32, #tpu.memory_space<vmem>>, vector<1x128xf32>
    %c37_112 = arith.constant 37 : index
    %c0_113 = arith.constant 0 : index
    %151 = vector.load %arg9[%c37_112, %c0_113] : memref<64x128xf32, #tpu.memory_space<vmem>>, vector<1x128xf32>
    tpu.vector_store %arg9[%c37_112, %c0_113], %150 {strides = array<i32>} : memref<64x128xf32, #tpu.memory_space<vmem>>, vector<1x128xf32>,
    %c38 = arith.constant 38 : index
    %152 = memref.load %arg0[%c38] : memref<64xi32, #tpu.memory_space<smem>>
    %153 = arith.index_cast %152 : i32 to index
    %c0_114 = arith.constant 0 : index
    %154 = vector.load %arg1[%153, %c0_114] : memref<56x128xf32, #tpu.memory_space<vmem>>, vector<1x128xf32>
    %c38_115 = arith.constant 38 : index
    %c0_116 = arith.constant 0 : index
    %155 = vector.load %arg9[%c38_115, %c0_116] : memref<64x128xf32, #tpu.memory_space<vmem>>, vector<1x128xf32>
    tpu.vector_store %arg9[%c38_115, %c0_116], %154 {strides = array<i32>} : memref<64x128xf32, #tpu.memory_space<vmem>>, vector<1x128xf32>,
    %c39 = arith.constant 39 : index
    %156 = memref.load %arg0[%c39] : memref<64xi32, #tpu.memory_space<smem>>
    %157 = arith.index_cast %156 : i32 to index
    %c0_117 = arith.constant 0 : index
    %158 = vector.load %arg1[%157, %c0_117] : memref<56x128xf32, #tpu.memory_space<vmem>>, vector<1x128xf32>
    %c39_118 = arith.constant 39 : index
    %c0_119 = arith.constant 0 : index
    %159 = vector.load %arg9[%c39_118, %c0_119] : memref<64x128xf32, #tpu.memory_space<vmem>>, vector<1x128xf32>
    tpu.vector_store %arg9[%c39_118, %c0_119], %158 {strides = array<i32>} : memref<64x128xf32, #tpu.memory_space<vmem>>, vector<1x128xf32>,
    %c40 = arith.constant 40 : index
    %160 = memref.load %arg0[%c40] : memref<64xi32, #tpu.memory_space<smem>>
    %161 = arith.index_cast %160 : i32 to index
    %c0_120 = arith.constant 0 : index
    %162 = vector.load %arg1[%161, %c0_120] : memref<56x128xf32, #tpu.memory_space<vmem>>, vector<1x128xf32>
    %c40_121 = arith.constant 40 : index
    %c0_122 = arith.constant 0 : index
    %163 = vector.load %arg9[%c40_121, %c0_122] : memref<64x128xf32, #tpu.memory_space<vmem>>, vector<1x128xf32>
    tpu.vector_store %arg9[%c40_121, %c0_122], %162 {strides = array<i32>} : memref<64x128xf32, #tpu.memory_space<vmem>>, vector<1x128xf32>,
    %c41 = arith.constant 41 : index
    %164 = memref.load %arg0[%c41] : memref<64xi32, #tpu.memory_space<smem>>
    %165 = arith.index_cast %164 : i32 to index
    %c0_123 = arith.constant 0 : index
    %166 = vector.load %arg1[%165, %c0_123] : memref<56x128xf32, #tpu.memory_space<vmem>>, vector<1x128xf32>
    %c41_124 = arith.constant 41 : index
    %c0_125 = arith.constant 0 : index
    %167 = vector.load %arg9[%c41_124, %c0_125] : memref<64x128xf32, #tpu.memory_space<vmem>>, vector<1x128xf32>
    tpu.vector_store %arg9[%c41_124, %c0_125], %166 {strides = array<i32>} : memref<64x128xf32, #tpu.memory_space<vmem>>, vector<1x128xf32>,
    %c42 = arith.constant 42 : index
    %168 = memref.load %arg0[%c42] : memref<64xi32, #tpu.memory_space<smem>>
    %169 = arith.index_cast %168 : i32 to index
    %c0_126 = arith.constant 0 : index
    %170 = vector.load %arg1[%169, %c0_126] : memref<56x128xf32, #tpu.memory_space<vmem>>, vector<1x128xf32>
    %c42_127 = arith.constant 42 : index
    %c0_128 = arith.constant 0 : index
    %171 = vector.load %arg9[%c42_127, %c0_128] : memref<64x128xf32, #tpu.memory_space<vmem>>, vector<1x128xf32>
    tpu.vector_store %arg9[%c42_127, %c0_128], %170 {strides = array<i32>} : memref<64x128xf32, #tpu.memory_space<vmem>>, vector<1x128xf32>,
    %c43 = arith.constant 43 : index
    %172 = memref.load %arg0[%c43] : memref<64xi32, #tpu.memory_space<smem>>
    %173 = arith.index_cast %172 : i32 to index
    %c0_129 = arith.constant 0 : index
    %174 = vector.load %arg1[%173, %c0_129] : memref<56x128xf32, #tpu.memory_space<vmem>>, vector<1x128xf32>
    %c43_130 = arith.constant 43 : index
    %c0_131 = arith.constant 0 : index
    %175 = vector.load %arg9[%c43_130, %c0_131] : memref<64x128xf32, #tpu.memory_space<vmem>>, vector<1x128xf32>
    tpu.vector_store %arg9[%c43_130, %c0_131], %174 {strides = array<i32>} : memref<64x128xf32, #tpu.memory_space<vmem>>, vector<1x128xf32>,
    %c44 = arith.constant 44 : index
    %176 = memref.load %arg0[%c44] : memref<64xi32, #tpu.memory_space<smem>>
    %177 = arith.index_cast %176 : i32 to index
    %c0_132 = arith.constant 0 : index
    %178 = vector.load %arg1[%177, %c0_132] : memref<56x128xf32, #tpu.memory_space<vmem>>, vector<1x128xf32>
    %c44_133 = arith.constant 44 : index
    %c0_134 = arith.constant 0 : index
    %179 = vector.load %arg9[%c44_133, %c0_134] : memref<64x128xf32, #tpu.memory_space<vmem>>, vector<1x128xf32>
    tpu.vector_store %arg9[%c44_133, %c0_134], %178 {strides = array<i32>} : memref<64x128xf32, #tpu.memory_space<vmem>>, vector<1x128xf32>,
    %c45 = arith.constant 45 : index
    %180 = memref.load %arg0[%c45] : memref<64xi32, #tpu.memory_space<smem>>
    %181 = arith.index_cast %180 : i32 to index
    %c0_135 = arith.constant 0 : index
    %182 = vector.load %arg1[%181, %c0_135] : memref<56x128xf32, #tpu.memory_space<vmem>>, vector<1x128xf32>
    %c45_136 = arith.constant 45 : index
    %c0_137 = arith.constant 0 : index
    %183 = vector.load %arg9[%c45_136, %c0_137] : memref<64x128xf32, #tpu.memory_space<vmem>>, vector<1x128xf32>
    tpu.vector_store %arg9[%c45_136, %c0_137], %182 {strides = array<i32>} : memref<64x128xf32, #tpu.memory_space<vmem>>, vector<1x128xf32>,
    %c46 = arith.constant 46 : index
    %184 = memref.load %arg0[%c46] : memref<64xi32, #tpu.memory_space<smem>>
    %185 = arith.index_cast %184 : i32 to index
    %c0_138 = arith.constant 0 : index
    %186 = vector.load %arg1[%185, %c0_138] : memref<56x128xf32, #tpu.memory_space<vmem>>, vector<1x128xf32>
    %c46_139 = arith.constant 46 : index
    %c0_140 = arith.constant 0 : index
    %187 = vector.load %arg9[%c46_139, %c0_140] : memref<64x128xf32, #tpu.memory_space<vmem>>, vector<1x128xf32>
    tpu.vector_store %arg9[%c46_139, %c0_140], %186 {strides = array<i32>} : memref<64x128xf32, #tpu.memory_space<vmem>>, vector<1x128xf32>,
    %c47 = arith.constant 47 : index
    %188 = memref.load %arg0[%c47] : memref<64xi32, #tpu.memory_space<smem>>
    %189 = arith.index_cast %188 : i32 to index
    %c0_141 = arith.constant 0 : index
    %190 = vector.load %arg1[%189, %c0_141] : memref<56x128xf32, #tpu.memory_space<vmem>>, vector<1x128xf32>
    %c47_142 = arith.constant 47 : index
    %c0_143 = arith.constant 0 : index
    %191 = vector.load %arg9[%c47_142, %c0_143] : memref<64x128xf32, #tpu.memory_space<vmem>>, vector<1x128xf32>
    tpu.vector_store %arg9[%c47_142, %c0_143], %190 {strides = array<i32>} : memref<64x128xf32, #tpu.memory_space<vmem>>, vector<1x128xf32>,
    %c48 = arith.constant 48 : index
    %192 = memref.load %arg0[%c48] : memref<64xi32, #tpu.memory_space<smem>>
    %193 = arith.index_cast %192 : i32 to index
    %c0_144 = arith.constant 0 : index
    %194 = vector.load %arg1[%193, %c0_144] : memref<56x128xf32, #tpu.memory_space<vmem>>, vector<1x128xf32>
    %c48_145 = arith.constant 48 : index
    %c0_146 = arith.constant 0 : index
    %195 = vector.load %arg9[%c48_145, %c0_146] : memref<64x128xf32, #tpu.memory_space<vmem>>, vector<1x128xf32>
    tpu.vector_store %arg9[%c48_145, %c0_146], %194 {strides = array<i32>} : memref<64x128xf32, #tpu.memory_space<vmem>>, vector<1x128xf32>,
    %c49 = arith.constant 49 : index
    %196 = memref.load %arg0[%c49] : memref<64xi32, #tpu.memory_space<smem>>
    %197 = arith.index_cast %196 : i32 to index
    %c0_147 = arith.constant 0 : index
    %198 = vector.load %arg1[%197, %c0_147] : memref<56x128xf32, #tpu.memory_space<vmem>>, vector<1x128xf32>
    %c49_148 = arith.constant 49 : index
    %c0_149 = arith.constant 0 : index
    %199 = vector.load %arg9[%c49_148, %c0_149] : memref<64x128xf32, #tpu.memory_space<vmem>>, vector<1x128xf32>
    tpu.vector_store %arg9[%c49_148, %c0_149], %198 {strides = array<i32>} : memref<64x128xf32, #tpu.memory_space<vmem>>, vector<1x128xf32>,
    %c50 = arith.constant 50 : index
    %200 = memref.load %arg0[%c50] : memref<64xi32, #tpu.memory_space<smem>>
    %201 = arith.index_cast %200 : i32 to index
    %c0_150 = arith.constant 0 : index
    %202 = vector.load %arg1[%201, %c0_150] : memref<56x128xf32, #tpu.memory_space<vmem>>, vector<1x128xf32>
    %c50_151 = arith.constant 50 : index
    %c0_152 = arith.constant 0 : index
    %203 = vector.load %arg9[%c50_151, %c0_152] : memref<64x128xf32, #tpu.memory_space<vmem>>, vector<1x128xf32>
    tpu.vector_store %arg9[%c50_151, %c0_152], %202 {strides = array<i32>} : memref<64x128xf32, #tpu.memory_space<vmem>>, vector<1x128xf32>,
    %c51 = arith.constant 51 : index
    %204 = memref.load %arg0[%c51] : memref<64xi32, #tpu.memory_space<smem>>
    %205 = arith.index_cast %204 : i32 to index
    %c0_153 = arith.constant 0 : index
    %206 = vector.load %arg1[%205, %c0_153] : memref<56x128xf32, #tpu.memory_space<vmem>>, vector<1x128xf32>
    %c51_154 = arith.constant 51 : index
    %c0_155 = arith.constant 0 : index
    %207 = vector.load %arg9[%c51_154, %c0_155] : memref<64x128xf32, #tpu.memory_space<vmem>>, vector<1x128xf32>
    tpu.vector_store %arg9[%c51_154, %c0_155], %206 {strides = array<i32>} : memref<64x128xf32, #tpu.memory_space<vmem>>, vector<1x128xf32>,
    %c52 = arith.constant 52 : index
    %208 = memref.load %arg0[%c52] : memref<64xi32, #tpu.memory_space<smem>>
    %209 = arith.index_cast %208 : i32 to index
    %c0_156 = arith.constant 0 : index
    %210 = vector.load %arg1[%209, %c0_156] : memref<56x128xf32, #tpu.memory_space<vmem>>, vector<1x128xf32>
    %c52_157 = arith.constant 52 : index
    %c0_158 = arith.constant 0 : index
    %211 = vector.load %arg9[%c52_157, %c0_158] : memref<64x128xf32, #tpu.memory_space<vmem>>, vector<1x128xf32>
    tpu.vector_store %arg9[%c52_157, %c0_158], %210 {strides = array<i32>} : memref<64x128xf32, #tpu.memory_space<vmem>>, vector<1x128xf32>,
    %c53 = arith.constant 53 : index
    %212 = memref.load %arg0[%c53] : memref<64xi32, #tpu.memory_space<smem>>
    %213 = arith.index_cast %212 : i32 to index
    %c0_159 = arith.constant 0 : index
    %214 = vector.load %arg1[%213, %c0_159] : memref<56x128xf32, #tpu.memory_space<vmem>>, vector<1x128xf32>
    %c53_160 = arith.constant 53 : index
    %c0_161 = arith.constant 0 : index
    %215 = vector.load %arg9[%c53_160, %c0_161] : memref<64x128xf32, #tpu.memory_space<vmem>>, vector<1x128xf32>
    tpu.vector_store %arg9[%c53_160, %c0_161], %214 {strides = array<i32>} : memref<64x128xf32, #tpu.memory_space<vmem>>, vector<1x128xf32>,
    %c54 = arith.constant 54 : index
    %216 = memref.load %arg0[%c54] : memref<64xi32, #tpu.memory_space<smem>>
    %217 = arith.index_cast %216 : i32 to index
    %c0_162 = arith.constant 0 : index
    %218 = vector.load %arg1[%217, %c0_162] : memref<56x128xf32, #tpu.memory_space<vmem>>, vector<1x128xf32>
    %c54_163 = arith.constant 54 : index
    %c0_164 = arith.constant 0 : index
    %219 = vector.load %arg9[%c54_163, %c0_164] : memref<64x128xf32, #tpu.memory_space<vmem>>, vector<1x128xf32>
    tpu.vector_store %arg9[%c54_163, %c0_164], %218 {strides = array<i32>} : memref<64x128xf32, #tpu.memory_space<vmem>>, vector<1x128xf32>,
    %c55 = arith.constant 55 : index
    %220 = memref.load %arg0[%c55] : memref<64xi32, #tpu.memory_space<smem>>
    %221 = arith.index_cast %220 : i32 to index
    %c0_165 = arith.constant 0 : index
    %222 = vector.load %arg1[%221, %c0_165] : memref<56x128xf32, #tpu.memory_space<vmem>>, vector<1x128xf32>
    %c55_166 = arith.constant 55 : index
    %c0_167 = arith.constant 0 : index
    %223 = vector.load %arg9[%c55_166, %c0_167] : memref<64x128xf32, #tpu.memory_space<vmem>>, vector<1x128xf32>
    tpu.vector_store %arg9[%c55_166, %c0_167], %222 {strides = array<i32>} : memref<64x128xf32, #tpu.memory_space<vmem>>, vector<1x128xf32>,
    %c56 = arith.constant 56 : index
    %224 = memref.load %arg0[%c56] : memref<64xi32, #tpu.memory_space<smem>>
    %225 = arith.index_cast %224 : i32 to index
    %c0_168 = arith.constant 0 : index
    %226 = vector.load %arg1[%225, %c0_168] : memref<56x128xf32, #tpu.memory_space<vmem>>, vector<1x128xf32>
    %c56_169 = arith.constant 56 : index
    %c0_170 = arith.constant 0 : index
    %227 = vector.load %arg9[%c56_169, %c0_170] : memref<64x128xf32, #tpu.memory_space<vmem>>, vector<1x128xf32>
    tpu.vector_store %arg9[%c56_169, %c0_170], %226 {strides = array<i32>} : memref<64x128xf32, #tpu.memory_space<vmem>>, vector<1x128xf32>,
    %c57 = arith.constant 57 : index
    %228 = memref.load %arg0[%c57] : memref<64xi32, #tpu.memory_space<smem>>
    %229 = arith.index_cast %228 : i32 to index
    %c0_171 = arith.constant 0 : index
    %230 = vector.load %arg1[%229, %c0_171] : memref<56x128xf32, #tpu.memory_space<vmem>>, vector<1x128xf32>
    %c57_172 = arith.constant 57 : index
    %c0_173 = arith.constant 0 : index
    %231 = vector.load %arg9[%c57_172, %c0_173] : memref<64x128xf32, #tpu.memory_space<vmem>>, vector<1x128xf32>
    tpu.vector_store %arg9[%c57_172, %c0_173], %230 {strides = array<i32>} : memref<64x128xf32, #tpu.memory_space<vmem>>, vector<1x128xf32>,
    %c58 = arith.constant 58 : index
    %232 = memref.load %arg0[%c58] : memref<64xi32, #tpu.memory_space<smem>>
    %233 = arith.index_cast %232 : i32 to index
    %c0_174 = arith.constant 0 : index
    %234 = vector.load %arg1[%233, %c0_174] : memref<56x128xf32, #tpu.memory_space<vmem>>, vector<1x128xf32>
    %c58_175 = arith.constant 58 : index
    %c0_176 = arith.constant 0 : index
    %235 = vector.load %arg9[%c58_175, %c0_176] : memref<64x128xf32, #tpu.memory_space<vmem>>, vector<1x128xf32>
    tpu.vector_store %arg9[%c58_175, %c0_176], %234 {strides = array<i32>} : memref<64x128xf32, #tpu.memory_space<vmem>>, vector<1x128xf32>,
    %c59 = arith.constant 59 : index
    %236 = memref.load %arg0[%c59] : memref<64xi32, #tpu.memory_space<smem>>
    %237 = arith.index_cast %236 : i32 to index
    %c0_177 = arith.constant 0 : index
    %238 = vector.load %arg1[%237, %c0_177] : memref<56x128xf32, #tpu.memory_space<vmem>>, vector<1x128xf32>
    %c59_178 = arith.constant 59 : index
    %c0_179 = arith.constant 0 : index
    %239 = vector.load %arg9[%c59_178, %c0_179] : memref<64x128xf32, #tpu.memory_space<vmem>>, vector<1x128xf32>
    tpu.vector_store %arg9[%c59_178, %c0_179], %238 {strides = array<i32>} : memref<64x128xf32, #tpu.memory_space<vmem>>, vector<1x128xf32>,
    %c60 = arith.constant 60 : index
    %240 = memref.load %arg0[%c60] : memref<64xi32, #tpu.memory_space<smem>>
    %241 = arith.index_cast %240 : i32 to index
    %c0_180 = arith.constant 0 : index
    %242 = vector.load %arg1[%241, %c0_180] : memref<56x128xf32, #tpu.memory_space<vmem>>, vector<1x128xf32>
    %c60_181 = arith.constant 60 : index
    %c0_182 = arith.constant 0 : index
    %243 = vector.load %arg9[%c60_181, %c0_182] : memref<64x128xf32, #tpu.memory_space<vmem>>, vector<1x128xf32>
    tpu.vector_store %arg9[%c60_181, %c0_182], %242 {strides = array<i32>} : memref<64x128xf32, #tpu.memory_space<vmem>>, vector<1x128xf32>,
    %c61 = arith.constant 61 : index
    %244 = memref.load %arg0[%c61] : memref<64xi32, #tpu.memory_space<smem>>
    %245 = arith.index_cast %244 : i32 to index
    %c0_183 = arith.constant 0 : index
    %246 = vector.load %arg1[%245, %c0_183] : memref<56x128xf32, #tpu.memory_space<vmem>>, vector<1x128xf32>
    %c61_184 = arith.constant 61 : index
    %c0_185 = arith.constant 0 : index
    %247 = vector.load %arg9[%c61_184, %c0_185] : memref<64x128xf32, #tpu.memory_space<vmem>>, vector<1x128xf32>
    tpu.vector_store %arg9[%c61_184, %c0_185], %246 {strides = array<i32>} : memref<64x128xf32, #tpu.memory_space<vmem>>, vector<1x128xf32>,
    %c62 = arith.constant 62 : index
    %248 = memref.load %arg0[%c62] : memref<64xi32, #tpu.memory_space<smem>>
    %249 = arith.index_cast %248 : i32 to index
    %c0_186 = arith.constant 0 : index
    %250 = vector.load %arg1[%249, %c0_186] : memref<56x128xf32, #tpu.memory_space<vmem>>, vector<1x128xf32>
    %c62_187 = arith.constant 62 : index
    %c0_188 = arith.constant 0 : index
    %251 = vector.load %arg9[%c62_187, %c0_188] : memref<64x128xf32, #tpu.memory_space<vmem>>, vector<1x128xf32>
    tpu.vector_store %arg9[%c62_187, %c0_188], %250 {strides = array<i32>} : memref<64x128xf32, #tpu.memory_space<vmem>>, vector<1x128xf32>,
    %c63 = arith.constant 63 : index
    %252 = memref.load %arg0[%c63] : memref<64xi32, #tpu.memory_space<smem>>
    %253 = arith.index_cast %252 : i32 to index
    %c0_189 = arith.constant 0 : index
    %254 = vector.load %arg1[%253, %c0_189] : memref<56x128xf32, #tpu.memory_space<vmem>>, vector<1x128xf32>
    %c63_190 = arith.constant 63 : index
    %c0_191 = arith.constant 0 : index
    %255 = vector.load %arg9[%c63_190, %c0_191] : memref<64x128xf32, #tpu.memory_space<vmem>>, vector<1x128xf32>
    tpu.vector_store %arg9[%c63_190, %c0_191], %254 {strides = array<i32>} : memref<64x128xf32, #tpu.memory_space<vmem>>, vector<1x128xf32>,
    %c0_192 = arith.constant 0 : index
    %c0_193 = arith.constant 0 : index
    %256 = vector.load %arg9[%c0_192, %c0_193] : memref<64x128xf32, #tpu.memory_space<vmem>>, vector<64x128xf32>
    %257 = arith.truncf %256 : vector<64x128xf32> to vector<64x128xbf16>
    %c0_194 = arith.constant 0 : index
    %c0_195 = arith.constant 0 : index
    %258 = vector.load %arg2[%c0_194, %c0_195] : memref<128x384xbf16, #tpu.memory_space<vmem>>, vector<128x384xbf16>
    %cst = arith.constant dense<0.000000e+00> : vector<64x384xf32>
    %259 = tpu.matmul %257, %258, %cst {dimension_numbers = #tpu.dot_dimension_numbers<[1], [0], [0], [1], [0, 0, 1, 1], [], []>} : vector<64x128xbf16>, vector<128x384xbf16>, vector<64x384xf32> -> vector<64x384xf32>
    %c0_196 = arith.constant 0 : index
    %c0_197 = arith.constant 0 : index
    %260 = vector.load %arg4[%c0_196, %c0_197] : memref<1x384xf32, #tpu.memory_space<vmem>>, vector<1x384xf32>
    %261 = vector.broadcast %260 : vector<1x384xf32> to vector<64x384xf32>
    %262 = arith.addf %259, %261 : vector<64x384xf32>
    %c0_198 = arith.constant 0 : index
    %c0_199 = arith.constant 0 : index
    %263 = vector.load %arg3[%c0_198, %c0_199] : memref<128x384xbf16, #tpu.memory_space<vmem>>, vector<128x384xbf16>
    %c0_200 = arith.constant 0 : index
    %c0_201 = arith.constant 0 : index
    %264 = vector.load %arg5[%c0_200, %c0_201] : memref<1x128xf32, #tpu.memory_space<vmem>>, vector<1x128xf32>
    %cst_202 = arith.constant 0.000000e+00 : f32
    %265 = vector.broadcast %cst_202 : f32 to vector<8x128xf32>
    %266 = vector.extract_strided_slice %262 {offsets = [0, 0], sizes = [8, 384], strides = [1, 1]} : vector<64x384xf32> to vector<8x384xf32>
    %267 = arith.truncf %265 : vector<8x128xf32> to vector<8x128xbf16>
    %cst_203 = arith.constant dense<0.000000e+00> : vector<8x384xf32>
    %268 = tpu.matmul %267, %263, %cst_203 {dimension_numbers = #tpu.dot_dimension_numbers<[1], [0], [0], [1], [0, 0, 1, 1], [], []>} : vector<8x128xbf16>, vector<128x384xbf16>, vector<8x384xf32> -> vector<8x384xf32>
    %269 = vector.extract_strided_slice %266 {offsets = [0, 0], sizes = [8, 128], strides = [1, 1]} : vector<8x384xf32> to vector<8x128xf32>
    %270 = vector.extract_strided_slice %268 {offsets = [0, 0], sizes = [8, 128], strides = [1, 1]} : vector<8x384xf32> to vector<8x128xf32>
    %271 = arith.addf %269, %270 : vector<8x128xf32>
    %272 = arith.negf %271 : vector<8x128xf32>
    %273 = math.exp %272 : vector<8x128xf32>
    %cst_204 = arith.constant 1.000000e+00 : f32
    %274 = vector.broadcast %cst_204 : f32 to vector<8x128xf32>
    %275 = arith.addf %274, %273 : vector<8x128xf32>
    %276 = arith.divf %274, %275 : vector<8x128xf32>
    %277 = vector.extract_strided_slice %266 {offsets = [0, 128], sizes = [8, 128], strides = [1, 1]} : vector<8x384xf32> to vector<8x128xf32>
    %278 = vector.extract_strided_slice %268 {offsets = [0, 128], sizes = [8, 128], strides = [1, 1]} : vector<8x384xf32> to vector<8x128xf32>
    %279 = arith.addf %277, %278 : vector<8x128xf32>
    %280 = arith.negf %279 : vector<8x128xf32>
    %281 = math.exp %280 : vector<8x128xf32>
    %cst_205 = arith.constant 1.000000e+00 : f32
    %282 = vector.broadcast %cst_205 : f32 to vector<8x128xf32>
    %283 = arith.addf %282, %281 : vector<8x128xf32>
    %284 = arith.divf %282, %283 : vector<8x128xf32>
    %285 = vector.extract_strided_slice %266 {offsets = [0, 256], sizes = [8, 128], strides = [1, 1]} : vector<8x384xf32> to vector<8x128xf32>
    %286 = vector.extract_strided_slice %268 {offsets = [0, 256], sizes = [8, 128], strides = [1, 1]} : vector<8x384xf32> to vector<8x128xf32>
    %287 = vector.broadcast %264 : vector<1x128xf32> to vector<8x128xf32>
    %288 = arith.addf %286, %287 : vector<8x128xf32>
    %289 = arith.mulf %276, %288 : vector<8x128xf32>
    %290 = arith.addf %285, %289 : vector<8x128xf32>
    %291 = math.tanh %290 : vector<8x128xf32>
    %292 = arith.subf %265, %291 : vector<8x128xf32>
    %293 = arith.mulf %284, %292 : vector<8x128xf32>
    %294 = arith.addf %291, %293 : vector<8x128xf32>
    %295 = vector.extract_strided_slice %262 {offsets = [8, 0], sizes = [8, 384], strides = [1, 1]} : vector<64x384xf32> to vector<8x384xf32>
    %296 = arith.truncf %294 : vector<8x128xf32> to vector<8x128xbf16>
    %cst_206 = arith.constant dense<0.000000e+00> : vector<8x384xf32>
    %297 = tpu.matmul %296, %263, %cst_206 {dimension_numbers = #tpu.dot_dimension_numbers<[1], [0], [0], [1], [0, 0, 1, 1], [], []>} : vector<8x128xbf16>, vector<128x384xbf16>, vector<8x384xf32> -> vector<8x384xf32>
    %298 = vector.extract_strided_slice %295 {offsets = [0, 0], sizes = [8, 128], strides = [1, 1]} : vector<8x384xf32> to vector<8x128xf32>
    %299 = vector.extract_strided_slice %297 {offsets = [0, 0], sizes = [8, 128], strides = [1, 1]} : vector<8x384xf32> to vector<8x128xf32>
    %300 = arith.addf %298, %299 : vector<8x128xf32>
    %301 = arith.negf %300 : vector<8x128xf32>
    %302 = math.exp %301 : vector<8x128xf32>
    %cst_207 = arith.constant 1.000000e+00 : f32
    %303 = vector.broadcast %cst_207 : f32 to vector<8x128xf32>
    %304 = arith.addf %303, %302 : vector<8x128xf32>
    %305 = arith.divf %303, %304 : vector<8x128xf32>
    %306 = vector.extract_strided_slice %295 {offsets = [0, 128], sizes = [8, 128], strides = [1, 1]} : vector<8x384xf32> to vector<8x128xf32>
    %307 = vector.extract_strided_slice %297 {offsets = [0, 128], sizes = [8, 128], strides = [1, 1]} : vector<8x384xf32> to vector<8x128xf32>
    %308 = arith.addf %306, %307 : vector<8x128xf32>
    %309 = arith.negf %308 : vector<8x128xf32>
    %310 = math.exp %309 : vector<8x128xf32>
    %cst_208 = arith.constant 1.000000e+00 : f32
    %311 = vector.broadcast %cst_208 : f32 to vector<8x128xf32>
    %312 = arith.addf %311, %310 : vector<8x128xf32>
    %313 = arith.divf %311, %312 : vector<8x128xf32>
    %314 = vector.extract_strided_slice %295 {offsets = [0, 256], sizes = [8, 128], strides = [1, 1]} : vector<8x384xf32> to vector<8x128xf32>
    %315 = vector.extract_strided_slice %297 {offsets = [0, 256], sizes = [8, 128], strides = [1, 1]} : vector<8x384xf32> to vector<8x128xf32>
    %316 = vector.broadcast %264 : vector<1x128xf32> to vector<8x128xf32>
    %317 = arith.addf %315, %316 : vector<8x128xf32>
    %318 = arith.mulf %305, %317 : vector<8x128xf32>
    %319 = arith.addf %314, %318 : vector<8x128xf32>
    %320 = math.tanh %319 : vector<8x128xf32>
    %321 = arith.subf %294, %320 : vector<8x128xf32>
    %322 = arith.mulf %313, %321 : vector<8x128xf32>
    %323 = arith.addf %320, %322 : vector<8x128xf32>
    %324 = vector.extract_strided_slice %262 {offsets = [16, 0], sizes = [8, 384], strides = [1, 1]} : vector<64x384xf32> to vector<8x384xf32>
    %325 = arith.truncf %323 : vector<8x128xf32> to vector<8x128xbf16>
    %cst_209 = arith.constant dense<0.000000e+00> : vector<8x384xf32>
    %326 = tpu.matmul %325, %263, %cst_209 {dimension_numbers = #tpu.dot_dimension_numbers<[1], [0], [0], [1], [0, 0, 1, 1], [], []>} : vector<8x128xbf16>, vector<128x384xbf16>, vector<8x384xf32> -> vector<8x384xf32>
    %327 = vector.extract_strided_slice %324 {offsets = [0, 0], sizes = [8, 128], strides = [1, 1]} : vector<8x384xf32> to vector<8x128xf32>
    %328 = vector.extract_strided_slice %326 {offsets = [0, 0], sizes = [8, 128], strides = [1, 1]} : vector<8x384xf32> to vector<8x128xf32>
    %329 = arith.addf %327, %328 : vector<8x128xf32>
    %330 = arith.negf %329 : vector<8x128xf32>
    %331 = math.exp %330 : vector<8x128xf32>
    %cst_210 = arith.constant 1.000000e+00 : f32
    %332 = vector.broadcast %cst_210 : f32 to vector<8x128xf32>
    %333 = arith.addf %332, %331 : vector<8x128xf32>
    %334 = arith.divf %332, %333 : vector<8x128xf32>
    %335 = vector.extract_strided_slice %324 {offsets = [0, 128], sizes = [8, 128], strides = [1, 1]} : vector<8x384xf32> to vector<8x128xf32>
    %336 = vector.extract_strided_slice %326 {offsets = [0, 128], sizes = [8, 128], strides = [1, 1]} : vector<8x384xf32> to vector<8x128xf32>
    %337 = arith.addf %335, %336 : vector<8x128xf32>
    %338 = arith.negf %337 : vector<8x128xf32>
    %339 = math.exp %338 : vector<8x128xf32>
    %cst_211 = arith.constant 1.000000e+00 : f32
    %340 = vector.broadcast %cst_211 : f32 to vector<8x128xf32>
    %341 = arith.addf %340, %339 : vector<8x128xf32>
    %342 = arith.divf %340, %341 : vector<8x128xf32>
    %343 = vector.extract_strided_slice %324 {offsets = [0, 256], sizes = [8, 128], strides = [1, 1]} : vector<8x384xf32> to vector<8x128xf32>
    %344 = vector.extract_strided_slice %326 {offsets = [0, 256], sizes = [8, 128], strides = [1, 1]} : vector<8x384xf32> to vector<8x128xf32>
    %345 = vector.broadcast %264 : vector<1x128xf32> to vector<8x128xf32>
    %346 = arith.addf %344, %345 : vector<8x128xf32>
    %347 = arith.mulf %334, %346 : vector<8x128xf32>
    %348 = arith.addf %343, %347 : vector<8x128xf32>
    %349 = math.tanh %348 : vector<8x128xf32>
    %350 = arith.subf %323, %349 : vector<8x128xf32>
    %351 = arith.mulf %342, %350 : vector<8x128xf32>
    %352 = arith.addf %349, %351 : vector<8x128xf32>
    %353 = vector.extract_strided_slice %262 {offsets = [24, 0], sizes = [8, 384], strides = [1, 1]} : vector<64x384xf32> to vector<8x384xf32>
    %354 = arith.truncf %352 : vector<8x128xf32> to vector<8x128xbf16>
    %cst_212 = arith.constant dense<0.000000e+00> : vector<8x384xf32>
    %355 = tpu.matmul %354, %263, %cst_212 {dimension_numbers = #tpu.dot_dimension_numbers<[1], [0], [0], [1], [0, 0, 1, 1], [], []>} : vector<8x128xbf16>, vector<128x384xbf16>, vector<8x384xf32> -> vector<8x384xf32>
    %356 = vector.extract_strided_slice %353 {offsets = [0, 0], sizes = [8, 128], strides = [1, 1]} : vector<8x384xf32> to vector<8x128xf32>
    %357 = vector.extract_strided_slice %355 {offsets = [0, 0], sizes = [8, 128], strides = [1, 1]} : vector<8x384xf32> to vector<8x128xf32>
    %358 = arith.addf %356, %357 : vector<8x128xf32>
    %359 = arith.negf %358 : vector<8x128xf32>
    %360 = math.exp %359 : vector<8x128xf32>
    %cst_213 = arith.constant 1.000000e+00 : f32
    %361 = vector.broadcast %cst_213 : f32 to vector<8x128xf32>
    %362 = arith.addf %361, %360 : vector<8x128xf32>
    %363 = arith.divf %361, %362 : vector<8x128xf32>
    %364 = vector.extract_strided_slice %353 {offsets = [0, 128], sizes = [8, 128], strides = [1, 1]} : vector<8x384xf32> to vector<8x128xf32>
    %365 = vector.extract_strided_slice %355 {offsets = [0, 128], sizes = [8, 128], strides = [1, 1]} : vector<8x384xf32> to vector<8x128xf32>
    %366 = arith.addf %364, %365 : vector<8x128xf32>
    %367 = arith.negf %366 : vector<8x128xf32>
    %368 = math.exp %367 : vector<8x128xf32>
    %cst_214 = arith.constant 1.000000e+00 : f32
    %369 = vector.broadcast %cst_214 : f32 to vector<8x128xf32>
    %370 = arith.addf %369, %368 : vector<8x128xf32>
    %371 = arith.divf %369, %370 : vector<8x128xf32>
    %372 = vector.extract_strided_slice %353 {offsets = [0, 256], sizes = [8, 128], strides = [1, 1]} : vector<8x384xf32> to vector<8x128xf32>
    %373 = vector.extract_strided_slice %355 {offsets = [0, 256], sizes = [8, 128], strides = [1, 1]} : vector<8x384xf32> to vector<8x128xf32>
    %374 = vector.broadcast %264 : vector<1x128xf32> to vector<8x128xf32>
    %375 = arith.addf %373, %374 : vector<8x128xf32>
    %376 = arith.mulf %363, %375 : vector<8x128xf32>
    %377 = arith.addf %372, %376 : vector<8x128xf32>
    %378 = math.tanh %377 : vector<8x128xf32>
    %379 = arith.subf %352, %378 : vector<8x128xf32>
    %380 = arith.mulf %371, %379 : vector<8x128xf32>
    %381 = arith.addf %378, %380 : vector<8x128xf32>
    %382 = vector.extract_strided_slice %262 {offsets = [32, 0], sizes = [8, 384], strides = [1, 1]} : vector<64x384xf32> to vector<8x384xf32>
    %383 = arith.truncf %381 : vector<8x128xf32> to vector<8x128xbf16>
    %cst_215 = arith.constant dense<0.000000e+00> : vector<8x384xf32>
    %384 = tpu.matmul %383, %263, %cst_215 {dimension_numbers = #tpu.dot_dimension_numbers<[1], [0], [0], [1], [0, 0, 1, 1], [], []>} : vector<8x128xbf16>, vector<128x384xbf16>, vector<8x384xf32> -> vector<8x384xf32>
    %385 = vector.extract_strided_slice %382 {offsets = [0, 0], sizes = [8, 128], strides = [1, 1]} : vector<8x384xf32> to vector<8x128xf32>
    %386 = vector.extract_strided_slice %384 {offsets = [0, 0], sizes = [8, 128], strides = [1, 1]} : vector<8x384xf32> to vector<8x128xf32>
    %387 = arith.addf %385, %386 : vector<8x128xf32>
    %388 = arith.negf %387 : vector<8x128xf32>
    %389 = math.exp %388 : vector<8x128xf32>
    %cst_216 = arith.constant 1.000000e+00 : f32
    %390 = vector.broadcast %cst_216 : f32 to vector<8x128xf32>
    %391 = arith.addf %390, %389 : vector<8x128xf32>
    %392 = arith.divf %390, %391 : vector<8x128xf32>
    %393 = vector.extract_strided_slice %382 {offsets = [0, 128], sizes = [8, 128], strides = [1, 1]} : vector<8x384xf32> to vector<8x128xf32>
    %394 = vector.extract_strided_slice %384 {offsets = [0, 128], sizes = [8, 128], strides = [1, 1]} : vector<8x384xf32> to vector<8x128xf32>
    %395 = arith.addf %393, %394 : vector<8x128xf32>
    %396 = arith.negf %395 : vector<8x128xf32>
    %397 = math.exp %396 : vector<8x128xf32>
    %cst_217 = arith.constant 1.000000e+00 : f32
    %398 = vector.broadcast %cst_217 : f32 to vector<8x128xf32>
    %399 = arith.addf %398, %397 : vector<8x128xf32>
    %400 = arith.divf %398, %399 : vector<8x128xf32>
    %401 = vector.extract_strided_slice %382 {offsets = [0, 256], sizes = [8, 128], strides = [1, 1]} : vector<8x384xf32> to vector<8x128xf32>
    %402 = vector.extract_strided_slice %384 {offsets = [0, 256], sizes = [8, 128], strides = [1, 1]} : vector<8x384xf32> to vector<8x128xf32>
    %403 = vector.broadcast %264 : vector<1x128xf32> to vector<8x128xf32>
    %404 = arith.addf %402, %403 : vector<8x128xf32>
    %405 = arith.mulf %392, %404 : vector<8x128xf32>
    %406 = arith.addf %401, %405 : vector<8x128xf32>
    %407 = math.tanh %406 : vector<8x128xf32>
    %408 = arith.subf %381, %407 : vector<8x128xf32>
    %409 = arith.mulf %400, %408 : vector<8x128xf32>
    %410 = arith.addf %407, %409 : vector<8x128xf32>
    %411 = vector.extract_strided_slice %262 {offsets = [40, 0], sizes = [8, 384], strides = [1, 1]} : vector<64x384xf32> to vector<8x384xf32>
    %412 = arith.truncf %410 : vector<8x128xf32> to vector<8x128xbf16>
    %cst_218 = arith.constant dense<0.000000e+00> : vector<8x384xf32>
    %413 = tpu.matmul %412, %263, %cst_218 {dimension_numbers = #tpu.dot_dimension_numbers<[1], [0], [0], [1], [0, 0, 1, 1], [], []>} : vector<8x128xbf16>, vector<128x384xbf16>, vector<8x384xf32> -> vector<8x384xf32>
    %414 = vector.extract_strided_slice %411 {offsets = [0, 0], sizes = [8, 128], strides = [1, 1]} : vector<8x384xf32> to vector<8x128xf32>
    %415 = vector.extract_strided_slice %413 {offsets = [0, 0], sizes = [8, 128], strides = [1, 1]} : vector<8x384xf32> to vector<8x128xf32>
    %416 = arith.addf %414, %415 : vector<8x128xf32>
    %417 = arith.negf %416 : vector<8x128xf32>
    %418 = math.exp %417 : vector<8x128xf32>
    %cst_219 = arith.constant 1.000000e+00 : f32
    %419 = vector.broadcast %cst_219 : f32 to vector<8x128xf32>
    %420 = arith.addf %419, %418 : vector<8x128xf32>
    %421 = arith.divf %419, %420 : vector<8x128xf32>
    %422 = vector.extract_strided_slice %411 {offsets = [0, 128], sizes = [8, 128], strides = [1, 1]} : vector<8x384xf32> to vector<8x128xf32>
    %423 = vector.extract_strided_slice %413 {offsets = [0, 128], sizes = [8, 128], strides = [1, 1]} : vector<8x384xf32> to vector<8x128xf32>
    %424 = arith.addf %422, %423 : vector<8x128xf32>
    %425 = arith.negf %424 : vector<8x128xf32>
    %426 = math.exp %425 : vector<8x128xf32>
    %cst_220 = arith.constant 1.000000e+00 : f32
    %427 = vector.broadcast %cst_220 : f32 to vector<8x128xf32>
    %428 = arith.addf %427, %426 : vector<8x128xf32>
    %429 = arith.divf %427, %428 : vector<8x128xf32>
    %430 = vector.extract_strided_slice %411 {offsets = [0, 256], sizes = [8, 128], strides = [1, 1]} : vector<8x384xf32> to vector<8x128xf32>
    %431 = vector.extract_strided_slice %413 {offsets = [0, 256], sizes = [8, 128], strides = [1, 1]} : vector<8x384xf32> to vector<8x128xf32>
    %432 = vector.broadcast %264 : vector<1x128xf32> to vector<8x128xf32>
    %433 = arith.addf %431, %432 : vector<8x128xf32>
    %434 = arith.mulf %421, %433 : vector<8x128xf32>
    %435 = arith.addf %430, %434 : vector<8x128xf32>
    %436 = math.tanh %435 : vector<8x128xf32>
    %437 = arith.subf %410, %436 : vector<8x128xf32>
    %438 = arith.mulf %429, %437 : vector<8x128xf32>
    %439 = arith.addf %436, %438 : vector<8x128xf32>
    %440 = vector.extract_strided_slice %262 {offsets = [48, 0], sizes = [8, 384], strides = [1, 1]} : vector<64x384xf32> to vector<8x384xf32>
    %441 = arith.truncf %439 : vector<8x128xf32> to vector<8x128xbf16>
    %cst_221 = arith.constant dense<0.000000e+00> : vector<8x384xf32>
    %442 = tpu.matmul %441, %263, %cst_221 {dimension_numbers = #tpu.dot_dimension_numbers<[1], [0], [0], [1], [0, 0, 1, 1], [], []>} : vector<8x128xbf16>, vector<128x384xbf16>, vector<8x384xf32> -> vector<8x384xf32>
    %443 = vector.extract_strided_slice %440 {offsets = [0, 0], sizes = [8, 128], strides = [1, 1]} : vector<8x384xf32> to vector<8x128xf32>
    %444 = vector.extract_strided_slice %442 {offsets = [0, 0], sizes = [8, 128], strides = [1, 1]} : vector<8x384xf32> to vector<8x128xf32>
    %445 = arith.addf %443, %444 : vector<8x128xf32>
    %446 = arith.negf %445 : vector<8x128xf32>
    %447 = math.exp %446 : vector<8x128xf32>
    %cst_222 = arith.constant 1.000000e+00 : f32
    %448 = vector.broadcast %cst_222 : f32 to vector<8x128xf32>
    %449 = arith.addf %448, %447 : vector<8x128xf32>
    %450 = arith.divf %448, %449 : vector<8x128xf32>
    %451 = vector.extract_strided_slice %440 {offsets = [0, 128], sizes = [8, 128], strides = [1, 1]} : vector<8x384xf32> to vector<8x128xf32>
    %452 = vector.extract_strided_slice %442 {offsets = [0, 128], sizes = [8, 128], strides = [1, 1]} : vector<8x384xf32> to vector<8x128xf32>
    %453 = arith.addf %451, %452 : vector<8x128xf32>
    %454 = arith.negf %453 : vector<8x128xf32>
    %455 = math.exp %454 : vector<8x128xf32>
    %cst_223 = arith.constant 1.000000e+00 : f32
    %456 = vector.broadcast %cst_223 : f32 to vector<8x128xf32>
    %457 = arith.addf %456, %455 : vector<8x128xf32>
    %458 = arith.divf %456, %457 : vector<8x128xf32>
    %459 = vector.extract_strided_slice %440 {offsets = [0, 256], sizes = [8, 128], strides = [1, 1]} : vector<8x384xf32> to vector<8x128xf32>
    %460 = vector.extract_strided_slice %442 {offsets = [0, 256], sizes = [8, 128], strides = [1, 1]} : vector<8x384xf32> to vector<8x128xf32>
    %461 = vector.broadcast %264 : vector<1x128xf32> to vector<8x128xf32>
    %462 = arith.addf %460, %461 : vector<8x128xf32>
    %463 = arith.mulf %450, %462 : vector<8x128xf32>
    %464 = arith.addf %459, %463 : vector<8x128xf32>
    %465 = math.tanh %464 : vector<8x128xf32>
    %466 = arith.subf %439, %465 : vector<8x128xf32>
    %467 = arith.mulf %458, %466 : vector<8x128xf32>
    %468 = arith.addf %465, %467 : vector<8x128xf32>
    %469 = vector.extract_strided_slice %262 {offsets = [56, 0], sizes = [8, 384], strides = [1, 1]} : vector<64x384xf32> to vector<8x384xf32>
    %470 = arith.truncf %468 : vector<8x128xf32> to vector<8x128xbf16>
    %cst_224 = arith.constant dense<0.000000e+00> : vector<8x384xf32>
    %471 = tpu.matmul %470, %263, %cst_224 {dimension_numbers = #tpu.dot_dimension_numbers<[1], [0], [0], [1], [0, 0, 1, 1], [], []>} : vector<8x128xbf16>, vector<128x384xbf16>, vector<8x384xf32> -> vector<8x384xf32>
    %472 = vector.extract_strided_slice %469 {offsets = [0, 0], sizes = [8, 128], strides = [1, 1]} : vector<8x384xf32> to vector<8x128xf32>
    %473 = vector.extract_strided_slice %471 {offsets = [0, 0], sizes = [8, 128], strides = [1, 1]} : vector<8x384xf32> to vector<8x128xf32>
    %474 = arith.addf %472, %473 : vector<8x128xf32>
    %475 = arith.negf %474 : vector<8x128xf32>
    %476 = math.exp %475 : vector<8x128xf32>
    %cst_225 = arith.constant 1.000000e+00 : f32
    %477 = vector.broadcast %cst_225 : f32 to vector<8x128xf32>
    %478 = arith.addf %477, %476 : vector<8x128xf32>
    %479 = arith.divf %477, %478 : vector<8x128xf32>
    %480 = vector.extract_strided_slice %469 {offsets = [0, 128], sizes = [8, 128], strides = [1, 1]} : vector<8x384xf32> to vector<8x128xf32>
    %481 = vector.extract_strided_slice %471 {offsets = [0, 128], sizes = [8, 128], strides = [1, 1]} : vector<8x384xf32> to vector<8x128xf32>
    %482 = arith.addf %480, %481 : vector<8x128xf32>
    %483 = arith.negf %482 : vector<8x128xf32>
    %484 = math.exp %483 : vector<8x128xf32>
    %cst_226 = arith.constant 1.000000e+00 : f32
    %485 = vector.broadcast %cst_226 : f32 to vector<8x128xf32>
    %486 = arith.addf %485, %484 : vector<8x128xf32>
    %487 = arith.divf %485, %486 : vector<8x128xf32>
    %488 = vector.extract_strided_slice %469 {offsets = [0, 256], sizes = [8, 128], strides = [1, 1]} : vector<8x384xf32> to vector<8x128xf32>
    %489 = vector.extract_strided_slice %471 {offsets = [0, 256], sizes = [8, 128], strides = [1, 1]} : vector<8x384xf32> to vector<8x128xf32>
    %490 = vector.broadcast %264 : vector<1x128xf32> to vector<8x128xf32>
    %491 = arith.addf %489, %490 : vector<8x128xf32>
    %492 = arith.mulf %479, %491 : vector<8x128xf32>
    %493 = arith.addf %488, %492 : vector<8x128xf32>
    %494 = math.tanh %493 : vector<8x128xf32>
    %495 = arith.subf %468, %494 : vector<8x128xf32>
    %496 = arith.mulf %487, %495 : vector<8x128xf32>
    %497 = arith.addf %494, %496 : vector<8x128xf32>
    %c0_227 = arith.constant 0 : index
    %c0_228 = arith.constant 0 : index
    %498 = vector.load %arg6[%c0_227, %c0_228] : memref<1x128xf32, #tpu.memory_space<vmem>>, vector<1x128xf32>
    %499 = vector.broadcast %498 : vector<1x128xf32> to vector<8x128xf32>
    %500 = arith.mulf %497, %499 : vector<8x128xf32>
    %cst_229 = arith.constant dense<0.000000e+00> : vector<8xf32>
    %501 = vector.multi_reduction <add>, %500, %cst_229 [1] : vector<8x128xf32> to vector<8xf32>
    %502 = vector.shape_cast %501 : vector<8xf32> to vector<8x1xf32>
    %c0_230 = arith.constant 0 : index
    %c0_231 = arith.constant 0 : index
    %503 = vector.load %arg7[%c0_230, %c0_231] : memref<1x1xf32, #tpu.memory_space<vmem>>, vector<1x1xf32>
    %504 = vector.broadcast %503 : vector<1x1xf32> to vector<8x1xf32>
    %505 = arith.addf %502, %504 : vector<8x1xf32>
    %506 = arith.negf %505 : vector<8x1xf32>
    %507 = math.exp %506 : vector<8x1xf32>
    %cst_232 = arith.constant 1.000000e+00 : f32
    %508 = vector.broadcast %cst_232 : f32 to vector<8x1xf32>
    %509 = arith.addf %508, %507 : vector<8x1xf32>
    %510 = arith.divf %508, %509 : vector<8x1xf32>
    %c0_233 = arith.constant 0 : index
    %c0_234 = arith.constant 0 : index
    %511 = vector.load %arg8[%c0_233, %c0_234] : memref<8x1xf32, #tpu.memory_space<vmem>>, vector<8x1xf32>
    tpu.vector_store %arg8[%c0_233, %c0_234], %510 {strides = array<i32>} : memref<8x1xf32, #tpu.memory_space<vmem>>, vector<8x1xf32>,
    return
  }
}

</mosaic_0001>

<llo_original>
// kernel: tpu_custom_call.1
$region0: #{tpu_custom_call.1}
  #allocation0 [shape = 'u32[]', space=smem, size = 0x4, offset = 0x4, fixed_abs, tag = 'smem constant byte address 0x4 - core index']
  #allocation1 [shape = 'u32[144,128]{1,0:T(1,128)}', space=vmem, size = 0x12000, scoped, tag = 'internal scratch']
  #allocation2 [shape = 'f32[64,128]{1,0:T(8,128)}', space=vmem, size = 0x8000, scoped, tag = 'scratch operand']
  #allocation3 [shape = 'f32[1,1]{1,0:T(1,128)S(1)}', space=vmem, size = 0x200, scoped, tag = 'scoped memory for tpu_custom_call.1']
  %s0 = inlined_call_operand.vmem [shape: s32[64], index: 0, kind: input, shape index: {}]
  %s1 = inlined_call_operand.hbm [shape: f32[56,128], index: 1, kind: input, shape index: {}]
  %s2 = inlined_call_operand.hbm [shape: bf16[128,384], index: 2, kind: input, shape index: {}]
  %s3 = inlined_call_operand.hbm [shape: bf16[128,384], index: 3, kind: input, shape index: {}]
  %s4 = inlined_call_operand.vmem [shape: f32[1,384], index: 4, kind: input, shape index: {}]
  %s5 = inlined_call_operand.vmem [shape: f32[1,128], index: 5, kind: input, shape index: {}]
  %s6 = inlined_call_operand.vmem [shape: f32[1,128], index: 6, kind: input, shape index: {}]
  %s7 = inlined_call_operand.<no memory space> [shape: f32[1,1], index: 7, kind: input, shape index: {}]
  %s8 = inlined_call_operand.vmem [shape: f32[8,1], index: 8, kind: output, shape index: {}]
  %s9 = sld [smem:[#allocation0]]
  $region58: #{tpu_custom_call.1} parent=0
    _
  %s11 = ssub.s32 1, %s9
  %s12 = scalar_select 0, %s11, %s9
  %v13 = vstv %s7
  %14 = vst [vmem:[#allocation3] sm:$0x1] %v13
  $region1: #{tpu_custom_call.1} parent=0
    #allocation4 [shape = 'u8[512]{0}', space=smem, size = 0x200, scoped, tag = 'input window, operand 0, single buffered']
    #allocation5 [shape = 's32[1]{0}', space=sflag, size = 0x4, scoped, tag = 'scoped memory for tpu_custom_call.1']
    #allocation6 [shape = 's32[1]{0}', space=sflag, size = 0x4, scoped, tag = 'scoped memory for tpu_custom_call.1']
    #allocation7 [shape = 'u8[28672]{0}', space=vmem, size = 0x7000, scoped, tag = 'input window, operand 1, single buffered']
    #allocation8 [shape = 'u8[98304]{0}', space=vmem, size = 0x18000, scoped, tag = 'input window, operand 2, single buffered']
    #allocation9 [shape = 's32[1]{0}', space=sflag, size = 0x4, scoped, tag = 'scoped memory for tpu_custom_call.1']
    #allocation10 [shape = 'u8[98304]{0}', space=vmem, size = 0x18000, scoped, tag = 'input window, operand 3, single buffered']
    %15 = vsyncpa [#allocation6], 0
    %16 = vsyncpa [#allocation5], 0
    %17 = vsyncpa [#allocation9], 0
    // Predicated region
    $region2: #{tpu_custom_call.1} parent=1 // pred_check
      _
    $region3: #{tpu_custom_call.1} parent=1 // pred_check_branch
      %19 = sbr.rel (0) target = $region5
    $region4: #{tpu_custom_call.1} parent=1 // pred_region
      %s21 = ssub.s32 16, 16
      %22 = vsyncadd [#allocation6], %s21
      %s24 = sshll.u32 %s0, 4
      %s25 = int_to_ptr.vmem [resolvable:$true] %s24
      %27 = dma.vmem_to_smem %s25, 16, [#allocation4], [#allocation6]
    $region5: #{tpu_custom_call.1} parent=1 // pred_fallthru
      _
    // Predicated region
    $region6: #{tpu_custom_call.1} parent=1 // pred_check
      _
    $region7: #{tpu_custom_call.1} parent=1 // pred_check_branch
      %29 = sbr.rel (0) target = $region9
    $region8: #{tpu_custom_call.1} parent=1 // pred_region
      %s31 = ssub.s32 896, 896
      %32 = vsyncadd [#allocation5], %s31
      %s33 = sshll.u32 [#allocation7], 4
      %s34 = int_to_ptr.vmem [resolvable:$true] %s33
      %39 = dma.hbm_to_vmem [thread:$0]  %s1, 896, %s34, [#allocation5], 128, 128, 8
    $region9: #{tpu_custom_call.1} parent=1 // pred_fallthru
      _
    // Predicated region
    $region10: #{tpu_custom_call.1} parent=1 // pred_check
      _
    $region11: #{tpu_custom_call.1} parent=1 // pred_check_branch
      %41 = sbr.rel (0) target = $region13
    $region12: #{tpu_custom_call.1} parent=1 // pred_region
      %s43 = ssub.s32 3072, 3072
      %44 = vsyncadd [#allocation9], %s43
      %s45 = sshll.u32 [#allocation8], 4
      %s46 = int_to_ptr.vmem [resolvable:$true] %s45
      %51 = dma.hbm_to_vmem [thread:$0]  %s2, 3072, %s46, [#allocation9], 192, 192, 12
    $region13: #{tpu_custom_call.1} parent=1 // pred_fallthru
      _
    // Predicated region
    $region14: #{tpu_custom_call.1} parent=1 // pred_check
      _
    $region15: #{tpu_custom_call.1} parent=1 // pred_check_branch
      %53 = sbr.rel (0) target = $region17
    $region16: #{tpu_custom_call.1} parent=1 // pred_region
      %s55 = ssub.s32 3072, 3072
      %56 = vsyncadd [#allocation9], %s55
      %s57 = sshll.u32 [#allocation10], 4
      %s58 = int_to_ptr.vmem [resolvable:$true] %s57
      %63 = dma.hbm_to_vmem [thread:$0]  %s3, 3072, %s58, [#allocation9], 192, 192, 12
    $region17: #{tpu_custom_call.1} parent=1 // pred_fallthru
      _
    // Predicated region
    $region18: #{tpu_custom_call.1} parent=1 // pred_check
      _
    $region19: #{tpu_custom_call.1} parent=1 // pred_check_branch
      %65 = sbr.rel (0) target = $region21
    $region20: #{tpu_custom_call.1} parent=1 // pred_region
      _
    $region21: #{tpu_custom_call.1} parent=1 // pred_fallthru
      _
    // Predicated region
    $region22: #{tpu_custom_call.1} parent=1 // pred_check
      _
    $region23: #{tpu_custom_call.1} parent=1 // pred_check_branch
      %67 = sbr.rel (0) target = $region25
    $region24: #{tpu_custom_call.1} parent=1 // pred_region
      _
    $region25: #{tpu_custom_call.1} parent=1 // pred_fallthru
      _
    // Predicated region
    $region26: #{tpu_custom_call.1} parent=1 // pred_check
      _
    $region27: #{tpu_custom_call.1} parent=1 // pred_check_branch
      %69 = sbr.rel (0) target = $region29
    $region28: #{tpu_custom_call.1} parent=1 // pred_region
      _
    $region29: #{tpu_custom_call.1} parent=1 // pred_fallthru
      _
    // Predicated region
    $region30: #{tpu_custom_call.1} parent=1 // pred_check
      _
    $region31: #{tpu_custom_call.1} parent=1 // pred_check_branch
      %71 = sbr.rel (0) target = $region33
    $region32: #{tpu_custom_call.1} parent=1 // pred_region
      _
    $region33: #{tpu_custom_call.1} parent=1 // pred_fallthru
      _
    // Predicated region
    $region34: #{tpu_custom_call.1} parent=1 // pred_check
      _
    $region35: #{tpu_custom_call.1} parent=1 // pred_check_branch
      %73 = sbr.rel (0) target = $region37
    $region36: #{tpu_custom_call.1} parent=1 // pred_region
      %74 = dma.done [#allocation6], 16
    $region37: #{tpu_custom_call.1} parent=1 // pred_fallthru
      _
    // Predicated region
    $region38: #{tpu_custom_call.1} parent=1 // pred_check
      _
    $region39: #{tpu_custom_call.1} parent=1 // pred_check_branch
      %76 = sbr.rel (0) target = $region41
    $region40: #{tpu_custom_call.1} parent=1 // pred_region
      %77 = dma.done [#allocation5], 896
    $region41: #{tpu_custom_call.1} parent=1 // pred_fallthru
      _
    // Predicated region
    $region42: #{tpu_custom_call.1} parent=1 // pred_check
      _
    $region43: #{tpu_custom_call.1} parent=1 // pred_check_branch
      %79 = sbr.rel (0) target = $region45
    $region44: #{tpu_custom_call.1} parent=1 // pred_region
      %80 = dma.done [#allocation9], 3072
    $region45: #{tpu_custom_call.1} parent=1 // pred_fallthru
      _
    // Predicated region
    $region46: #{tpu_custom_call.1} parent=1 // pred_check
      _
    $region47: #{tpu_custom_call.1} parent=1 // pred_check_branch
      %82 = sbr.rel (0) target = $region49
    $region48: #{tpu_custom_call.1} parent=1 // pred_region
      %83 = dma.done [#allocation9], 3072
    $region49: #{tpu_custom_call.1} parent=1 // pred_fallthru
      _
    %84 = sfence
    %s86 = sld [smem:[#allocation4]]
    %s87 = scalar_lea.vmem [#allocation7], %s86
    %v88 = vld [vmem:[%s87] sm:$0x1]
    %89 = vst [vmem:[#allocation2] sm:$0x1] %v88
    %s90 = sld [smem:[#allocation4 + $0x1]]
    %s91 = scalar_lea.vmem [#allocation7], %s90
    %v92 = vld [vmem:[%s91] sm:$0x1]
    %93 = vst [vmem:[#allocation2 + $0x1] sm:$0x1] %v92
    %s94 = sld [smem:[#allocation4 + $0x2]]
    %s95 = scalar_lea.vmem [#allocation7], %s94
    %v96 = vld [vmem:[%s95] sm:$0x1]
    %97 = vst [vmem:[#allocation2 + $0x2] sm:$0x1] %v96
    %s98 = sld [smem:[#allocation4 + $0x3]]
    %s99 = scalar_lea.vmem [#allocation7], %s98
    %v100 = vld [vmem:[%s99] sm:$0x1]
    %101 = vst [vmem:[#allocation2 + $0x3] sm:$0x1] %v100
    %s102 = sld [smem:[#allocation4 + $0x4]]
    %s103 = scalar_lea.vmem [#allocation7], %s102
    %v104 = vld [vmem:[%s103] sm:$0x1]
    %105 = vst [vmem:[#allocation2 + $0x4] sm:$0x1] %v104
    %s106 = sld [smem:[#allocation4 + $0x5]]
    %s107 = scalar_lea.vmem [#allocation7], %s106
    %v108 = vld [vmem:[%s107] sm:$0x1]
    %109 = vst [vmem:[#allocation2 + $0x5] sm:$0x1] %v108
    %s110 = sld [smem:[#allocation4 + $0x6]]
    %s111 = scalar_lea.vmem [#allocation7], %s110
    %v112 = vld [vmem:[%s111] sm:$0x1]
    %113 = vst [vmem:[#allocation2 + $0x6] sm:$0x1] %v112
    %s114 = sld [smem:[#allocation4 + $0x7]]
    %s115 = scalar_lea.vmem [#allocation7], %s114
    %v116 = vld [vmem:[%s115] sm:$0x1]
    %117 = vst [vmem:[#allocation2 + $0x7] sm:$0x1] %v116
    %s118 = sld [smem:[#allocation4 + $0x8]]
    %s119 = scalar_lea.vmem [#allocation7], %s118
    %v120 = vld [vmem:[%s119] sm:$0x1]
    %121 = vst [vmem:[#allocation2 + $0x8] sm:$0x1] %v120
    %s122 = sld [smem:[#allocation4 + $0x9]]
    %s123 = scalar_lea.vmem [#allocation7], %s122
    %v124 = vld [vmem:[%s123] sm:$0x1]
    %125 = vst [vmem:[#allocation2 + $0x9] sm:$0x1] %v124
    %s126 = sld [smem:[#allocation4 + $0xa]]
    %s127 = scalar_lea.vmem [#allocation7], %s126
    %v128 = vld [vmem:[%s127] sm:$0x1]
    %129 = vst [vmem:[#allocation2 + $0xa] sm:$0x1] %v128
    %s130 = sld [smem:[#allocation4 + $0xb]]
    %s131 = scalar_lea.vmem [#allocation7], %s130
    %v132 = vld [vmem:[%s131] sm:$0x1]
    %133 = vst [vmem:[#allocation2 + $0xb] sm:$0x1] %v132
    %s134 = sld [smem:[#allocation4 + $0xc]]
    %s135 = scalar_lea.vmem [#allocation7], %s134
    %v136 = vld [vmem:[%s135] sm:$0x1]
    %137 = vst [vmem:[#allocation2 + $0xc] sm:$0x1] %v136
    %s138 = sld [smem:[#allocation4 + $0xd]]
    %s139 = scalar_lea.vmem [#allocation7], %s138
    %v140 = vld [vmem:[%s139] sm:$0x1]
    %141 = vst [vmem:[#allocation2 + $0xd] sm:$0x1] %v140
    %s142 = sld [smem:[#allocation4 + $0xe]]
    %s143 = scalar_lea.vmem [#allocation7], %s142
    %v144 = vld [vmem:[%s143] sm:$0x1]
    %145 = vst [vmem:[#allocation2 + $0xe] sm:$0x1] %v144
    %s146 = sld [smem:[#allocation4 + $0xf]]
    %s147 = scalar_lea.vmem [#allocation7], %s146
    %v148 = vld [vmem:[%s147] sm:$0x1]
    %149 = vst [vmem:[#allocation2 + $0xf] sm:$0x1] %v148
    %s150 = sld [smem:[#allocation4 + $0x10]]
    %s151 = scalar_lea.vmem [#allocation7], %s150
    %v152 = vld [vmem:[%s151] sm:$0x1]
    %153 = vst [vmem:[#allocation2 + $0x10] sm:$0x1] %v152
    %s154 = sld [smem:[#allocation4 + $0x11]]
    %s155 = scalar_lea.vmem [#allocation7], %s154
    %v156 = vld [vmem:[%s155] sm:$0x1]
    %157 = vst [vmem:[#allocation2 + $0x11] sm:$0x1] %v156
    %s158 = sld [smem:[#allocation4 + $0x12]]
    %s159 = scalar_lea.vmem [#allocation7], %s158
    %v160 = vld [vmem:[%s159] sm:$0x1]
    %161 = vst [vmem:[#allocation2 + $0x12] sm:$0x1] %v160
    %s162 = sld [smem:[#allocation4 + $0x13]]
    %s163 = scalar_lea.vmem [#allocation7], %s162
    %v164 = vld [vmem:[%s163] sm:$0x1]
    %165 = vst [vmem:[#allocation2 + $0x13] sm:$0x1] %v164
    %s166 = sld [smem:[#allocation4 + $0x14]]
    %s167 = scalar_lea.vmem [#allocation7], %s166
    %v168 = vld [vmem:[%s167] sm:$0x1]
    %169 = vst [vmem:[#allocation2 + $0x14] sm:$0x1] %v168
    %s170 = sld [smem:[#allocation4 + $0x15]]
    %s171 = scalar_lea.vmem [#allocation7], %s170
    %v172 = vld [vmem:[%s171] sm:$0x1]
    %173 = vst [vmem:[#allocation2 + $0x15] sm:$0x1] %v172
    %s174 = sld [smem:[#allocation4 + $0x16]]
    %s175 = scalar_lea.vmem [#allocation7], %s174
    %v176 = vld [vmem:[%s175] sm:$0x1]
    %177 = vst [vmem:[#allocation2 + $0x16] sm:$0x1] %v176
    %s178 = sld [smem:[#allocation4 + $0x17]]
    %s179 = scalar_lea.vmem [#allocation7], %s178
    %v180 = vld [vmem:[%s179] sm:$0x1]
    %181 = vst [vmem:[#allocation2 + $0x17] sm:$0x1] %v180
    %s182 = sld [smem:[#allocation4 + $0x18]]
    %s183 = scalar_lea.vmem [#allocation7], %s182
    %v184 = vld [vmem:[%s183] sm:$0x1]
    %185 = vst [vmem:[#allocation2 + $0x18] sm:$0x1] %v184
    %s186 = sld [smem:[#allocation4 + $0x19]]
    %s187 = scalar_lea.vmem [#allocation7], %s186
    %v188 = vld [vmem:[%s187] sm:$0x1]
    %189 = vst [vmem:[#allocation2 + $0x19] sm:$0x1] %v188
    %s190 = sld [smem:[#allocation4 + $0x1a]]
    %s191 = scalar_lea.vmem [#allocation7], %s190
    %v192 = vld [vmem:[%s191] sm:$0x1]
    %193 = vst [vmem:[#allocation2 + $0x1a] sm:$0x1] %v192
    %s194 = sld [smem:[#allocation4 + $0x1b]]
    %s195 = scalar_lea.vmem [#allocation7], %s194
    %v196 = vld [vmem:[%s195] sm:$0x1]
    %197 = vst [vmem:[#allocation2 + $0x1b] sm:$0x1] %v196
    %s198 = sld [smem:[#allocation4 + $0x1c]]
    %s199 = scalar_lea.vmem [#allocation7], %s198
    %v200 = vld [vmem:[%s199] sm:$0x1]
    %201 = vst [vmem:[#allocation2 + $0x1c] sm:$0x1] %v200
    %s202 = sld [smem:[#allocation4 + $0x1d]]
    %s203 = scalar_lea.vmem [#allocation7], %s202
    %v204 = vld [vmem:[%s203] sm:$0x1]
    %205 = vst [vmem:[#allocation2 + $0x1d] sm:$0x1] %v204
    %s206 = sld [smem:[#allocation4 + $0x1e]]
    %s207 = scalar_lea.vmem [#allocation7], %s206
    %v208 = vld [vmem:[%s207] sm:$0x1]
    %209 = vst [vmem:[#allocation2 + $0x1e] sm:$0x1] %v208
    %s210 = sld [smem:[#allocation4 + $0x1f]]
    %s211 = scalar_lea.vmem [#allocation7], %s210
    %v212 = vld [vmem:[%s211] sm:$0x1]
    %213 = vst [vmem:[#allocation2 + $0x1f] sm:$0x1] %v212
    %s214 = sld [smem:[#allocation4 + $0x20]]
    %s215 = scalar_lea.vmem [#allocation7], %s214
    %v216 = vld [vmem:[%s215] sm:$0x1]
    %217 = vst [vmem:[#allocation2 + $0x20] sm:$0x1] %v216
    %s218 = sld [smem:[#allocation4 + $0x21]]
    %s219 = scalar_lea.vmem [#allocation7], %s218
    %v220 = vld [vmem:[%s219] sm:$0x1]
    %221 = vst [vmem:[#allocation2 + $0x21] sm:$0x1] %v220
    %s222 = sld [smem:[#allocation4 + $0x22]]
    %s223 = scalar_lea.vmem [#allocation7], %s222
    %v224 = vld [vmem:[%s223] sm:$0x1]
    %225 = vst [vmem:[#allocation2 + $0x22] sm:$0x1] %v224
    %s226 = sld [smem:[#allocation4 + $0x23]]
    %s227 = scalar_lea.vmem [#allocation7], %s226
    %v228 = vld [vmem:[%s227] sm:$0x1]
    %229 = vst [vmem:[#allocation2 + $0x23] sm:$0x1] %v228
    %s230 = sld [smem:[#allocation4 + $0x24]]
    %s231 = scalar_lea.vmem [#allocation7], %s230
    %v232 = vld [vmem:[%s231] sm:$0x1]
    %233 = vst [vmem:[#allocation2 + $0x24] sm:$0x1] %v232
    %s234 = sld [smem:[#allocation4 + $0x25]]
    %s235 = scalar_lea.vmem [#allocation7], %s234
    %v236 = vld [vmem:[%s235] sm:$0x1]
    %237 = vst [vmem:[#allocation2 + $0x25] sm:$0x1] %v236
    %s238 = sld [smem:[#allocation4 + $0x26]]
    %s239 = scalar_lea.vmem [#allocation7], %s238
    %v240 = vld [vmem:[%s239] sm:$0x1]
    %241 = vst [vmem:[#allocation2 + $0x26] sm:$0x1] %v240
    %s242 = sld [smem:[#allocation4 + $0x27]]
    %s243 = scalar_lea.vmem [#allocation7], %s242
    %v244 = vld [vmem:[%s243] sm:$0x1]
    %245 = vst [vmem:[#allocation2 + $0x27] sm:$0x1] %v244
    %s246 = sld [smem:[#allocation4 + $0x28]]
    %s247 = scalar_lea.vmem [#allocation7], %s246
    %v248 = vld [vmem:[%s247] sm:$0x1]
    %249 = vst [vmem:[#allocation2 + $0x28] sm:$0x1] %v248
    %s250 = sld [smem:[#allocation4 + $0x29]]
    %s251 = scalar_lea.vmem [#allocation7], %s250
    %v252 = vld [vmem:[%s251] sm:$0x1]
    %253 = vst [vmem:[#allocation2 + $0x29] sm:$0x1] %v252
    %s254 = sld [smem:[#allocation4 + $0x2a]]
    %s255 = scalar_lea.vmem [#allocation7], %s254
    %v256 = vld [vmem:[%s255] sm:$0x1]
    %257 = vst [vmem:[#allocation2 + $0x2a] sm:$0x1] %v256
    %s258 = sld [smem:[#allocation4 + $0x2b]]
    %s259 = scalar_lea.vmem [#allocation7], %s258
    %v260 = vld [vmem:[%s259] sm:$0x1]
    %261 = vst [vmem:[#allocation2 + $0x2b] sm:$0x1] %v260
    %s262 = sld [smem:[#allocation4 + $0x2c]]
    %s263 = scalar_lea.vmem [#allocation7], %s262
    %v264 = vld [vmem:[%s263] sm:$0x1]
    %265 = vst [vmem:[#allocation2 + $0x2c] sm:$0x1] %v264
    %s266 = sld [smem:[#allocation4 + $0x2d]]
    %s267 = scalar_lea.vmem [#allocation7], %s266
    %v268 = vld [vmem:[%s267] sm:$0x1]
    %269 = vst [vmem:[#allocation2 + $0x2d] sm:$0x1] %v268
    %s270 = sld [smem:[#allocation4 + $0x2e]]
    %s271 = scalar_lea.vmem [#allocation7], %s270
    %v272 = vld [vmem:[%s271] sm:$0x1]
    %273 = vst [vmem:[#allocation2 + $0x2e] sm:$0x1] %v272
    %s274 = sld [smem:[#allocation4 + $0x2f]]
    %s275 = scalar_lea.vmem [#allocation7], %s274
    %v276 = vld [vmem:[%s275] sm:$0x1]
    %277 = vst [vmem:[#allocation2 + $0x2f] sm:$0x1] %v276
    %s278 = sld [smem:[#allocation4 + $0x30]]
    %s279 = scalar_lea.vmem [#allocation7], %s278
    %v280 = vld [vmem:[%s279] sm:$0x1]
    %281 = vst [vmem:[#allocation2 + $0x30] sm:$0x1] %v280
    %s282 = sld [smem:[#allocation4 + $0x31]]
    %s283 = scalar_lea.vmem [#allocation7], %s282
    %v284 = vld [vmem:[%s283] sm:$0x1]
    %285 = vst [vmem:[#allocation2 + $0x31] sm:$0x1] %v284
    %s286 = sld [smem:[#allocation4 + $0x32]]
    %s287 = scalar_lea.vmem [#allocation7], %s286
    %v288 = vld [vmem:[%s287] sm:$0x1]
    %289 = vst [vmem:[#allocation2 + $0x32] sm:$0x1] %v288
    %s290 = sld [smem:[#allocation4 + $0x33]]
    %s291 = scalar_lea.vmem [#allocation7], %s290
    %v292 = vld [vmem:[%s291] sm:$0x1]
    %293 = vst [vmem:[#allocation2 + $0x33] sm:$0x1] %v292
    %s294 = sld [smem:[#allocation4 + $0x34]]
    %s295 = scalar_lea.vmem [#allocation7], %s294
    %v296 = vld [vmem:[%s295] sm:$0x1]
    %297 = vst [vmem:[#allocation2 + $0x34] sm:$0x1] %v296
    %s298 = sld [smem:[#allocation4 + $0x35]]
    %s299 = scalar_lea.vmem [#allocation7], %s298
    %v300 = vld [vmem:[%s299] sm:$0x1]
    %301 = vst [vmem:[#allocation2 + $0x35] sm:$0x1] %v300
    %s302 = sld [smem:[#allocation4 + $0x36]]
    %s303 = scalar_lea.vmem [#allocation7], %s302
    %v304 = vld [vmem:[%s303] sm:$0x1]
    %305 = vst [vmem:[#allocation2 + $0x36] sm:$0x1] %v304
    %s306 = sld [smem:[#allocation4 + $0x37]]
    %s307 = scalar_lea.vmem [#allocation7], %s306
    %v308 = vld [vmem:[%s307] sm:$0x1]
    %309 = vst [vmem:[#allocation2 + $0x37] sm:$0x1] %v308
    %s310 = sld [smem:[#allocation4 + $0x38]]
    %s311 = scalar_lea.vmem [#allocation7], %s310
    %v312 = vld [vmem:[%s311] sm:$0x1]
    %313 = vst [vmem:[#allocation2 + $0x38] sm:$0x1] %v312
    %s314 = sld [smem:[#allocation4 + $0x39]]
    %s315 = scalar_lea.vmem [#allocation7], %s314
    %v316 = vld [vmem:[%s315] sm:$0x1]
    %317 = vst [vmem:[#allocation2 + $0x39] sm:$0x1] %v316
    %s318 = sld [smem:[#allocation4 + $0x3a]]
    %s319 = scalar_lea.vmem [#allocation7], %s318
    %v320 = vld [vmem:[%s319] sm:$0x1]
    %321 = vst [vmem:[#allocation2 + $0x3a] sm:$0x1] %v320
    %s322 = sld [smem:[#allocation4 + $0x3b]]
    %s323 = scalar_lea.vmem [#allocation7], %s322
    %v324 = vld [vmem:[%s323] sm:$0x1]
    %325 = vst [vmem:[#allocation2 + $0x3b] sm:$0x1] %v324
    %s326 = sld [smem:[#allocation4 + $0x3c]]
    %s327 = scalar_lea.vmem [#allocation7], %s326
    %v328 = vld [vmem:[%s327] sm:$0x1]
    %329 = vst [vmem:[#allocation2 + $0x3c] sm:$0x1] %v328
    %s330 = sld [smem:[#allocation4 + $0x3d]]
    %s331 = scalar_lea.vmem [#allocation7], %s330
    %v332 = vld [vmem:[%s331] sm:$0x1]
    %333 = vst [vmem:[#allocation2 + $0x3d] sm:$0x1] %v332
    %s334 = sld [smem:[#allocation4 + $0x3e]]
    %s335 = scalar_lea.vmem [#allocation7], %s334
    %v336 = vld [vmem:[%s335] sm:$0x1]
    %337 = vst [vmem:[#allocation2 + $0x3e] sm:$0x1] %v336
    %s338 = sld [smem:[#allocation4 + $0x3f]]
    %s339 = scalar_lea.vmem [#allocation7], %s338
    %v340 = vld [vmem:[%s339] sm:$0x1]
    %341 = vst [vmem:[#allocation2 + $0x3f] sm:$0x1] %v340
    %v342 = vld [vmem:[#allocation2] sm:$0xff]
    %v343 = vld [vmem:[#allocation2 + $0x8] sm:$0xff]
    %v344 = vld [vmem:[#allocation2 + $0x10] sm:$0xff]
    %v345 = vld [vmem:[#allocation2 + $0x18] sm:$0xff]
    %v346 = vld [vmem:[#allocation2 + $0x20] sm:$0xff]
    %v347 = vld [vmem:[#allocation2 + $0x28] sm:$0xff]
    %v348 = vld [vmem:[#allocation2 + $0x30] sm:$0xff]
    %v349 = vld [vmem:[#allocation2 + $0x38] sm:$0xff]
    %v350 = vpack.c.bf16 %v343, %v342
    %v351 = vpack.c.bf16 %v345, %v344
    %v352 = vpack.c.bf16 %v347, %v346
    %v353 = vpack.c.bf16 %v349, %v348
    %v354 = vld [vmem:[#allocation8] sm:$0xff]
    %v355 = vld [vmem:[#allocation8 + $0x8] sm:$0xf]
    %v356 = vld [vmem:[#allocation8 + $0xc] sm:$0xff]
    %v357 = vld [vmem:[#allocation8 + $0x14] sm:$0xf]
    %v358 = vld [vmem:[#allocation8 + $0x18] sm:$0xff]
    %v359 = vld [vmem:[#allocation8 + $0x20] sm:$0xf]
    %v360 = vld [vmem:[#allocation8 + $0x24] sm:$0xff]
    %v361 = vld [vmem:[#allocation8 + $0x2c] sm:$0xf]
    %v362 = vld [vmem:[#allocation8 + $0x30] sm:$0xff]
    %v363 = vld [vmem:[#allocation8 + $0x38] sm:$0xf]
    %v364 = vld [vmem:[#allocation8 + $0x3c] sm:$0xff]
    %v365 = vld [vmem:[#allocation8 + $0x44] sm:$0xf]
    %v366 = vld [vmem:[#allocation8 + $0x48] sm:$0xff]
    %v367 = vld [vmem:[#allocation8 + $0x50] sm:$0xf]
    %v368 = vld [vmem:[#allocation8 + $0x54] sm:$0xff]
    %v369 = vld [vmem:[#allocation8 + $0x5c] sm:$0xf]
    %v370 = vld [vmem:[#allocation8 + $0x60] sm:$0xff]
    %v371 = vld [vmem:[#allocation8 + $0x68] sm:$0xf]
    %v372 = vld [vmem:[#allocation8 + $0x6c] sm:$0xff]
    %v373 = vld [vmem:[#allocation8 + $0x74] sm:$0xf]
    %v374 = vld [vmem:[#allocation8 + $0x78] sm:$0xff]
    %v375 = vld [vmem:[#allocation8 + $0x80] sm:$0xf]
    %v376 = vld [vmem:[#allocation8 + $0x84] sm:$0xff]
    %v377 = vld [vmem:[#allocation8 + $0x8c] sm:$0xf]
    %v378 = vld [vmem:[#allocation8 + $0x90] sm:$0xff]
    %v379 = vld [vmem:[#allocation8 + $0x98] sm:$0xf]
    %v380 = vld [vmem:[#allocation8 + $0x9c] sm:$0xff]
    %v381 = vld [vmem:[#allocation8 + $0xa4] sm:$0xf]
    %v382 = vld [vmem:[#allocation8 + $0xa8] sm:$0xff]
    %v383 = vld [vmem:[#allocation8 + $0xb0] sm:$0xf]
    %v384 = vld [vmem:[#allocation8 + $0xb4] sm:$0xff]
    %v385 = vld [vmem:[#allocation8 + $0xbc] sm:$0xf]
    %v386 = vld [vmem:[%s4] sm:$0x7]
    %v388 = vlaneseq
    %v389 = vshrl.u32 %v388, 7
    %v390 = vsub.s32 0, %v389
    %v391 = vrot.slane %v386, %v390
    %v392 = vlaneseq
    %v393 = vshrl.u32 %v392, 7
    %v394 = vsub.s32 1, %v393
    %v395 = vrot.slane %v386, %v394
    %v396 = vlaneseq
    %v397 = vshrl.u32 %v396, 7
    %v398 = vsub.s32 2, %v397
    %v399 = vrot.slane %v386, %v398
    %v435 = vunpack.c.l.b16 %v354
    %v436 = vunpack.c.h.b16 %v354
    %v437 = vunpack.c.l.b16 %v355
    %v438 = vunpack.c.l.b16 %v356
    %v439 = vunpack.c.h.b16 %v356
    %v440 = vunpack.c.l.b16 %v357
    %v441 = vunpack.c.l.b16 %v358
    %v442 = vunpack.c.h.b16 %v358
    %v443 = vunpack.c.l.b16 %v359
    %v444 = vunpack.c.l.b16 %v360
    %v445 = vunpack.c.h.b16 %v360
    %v446 = vunpack.c.l.b16 %v361
    %v447 = vunpack.c.l.b16 %v362
    %v448 = vunpack.c.h.b16 %v362
    %v449 = vunpack.c.l.b16 %v363
    %v450 = vunpack.c.l.b16 %v364
    %v451 = vunpack.c.h.b16 %v364
    %v452 = vunpack.c.l.b16 %v365
    %v453 = vunpack.c.l.b16 %v366
    %v454 = vunpack.c.h.b16 %v366
    %v455 = vunpack.c.l.b16 %v367
    %v456 = vunpack.c.l.b16 %v368
    %v457 = vunpack.c.h.b16 %v368
    %v458 = vunpack.c.l.b16 %v369
    %v459 = vunpack.c.l.b16 %v370
    %v460 = vunpack.c.h.b16 %v370
    %v461 = vunpack.c.l.b16 %v371
    %v462 = vunpack.c.l.b16 %v372
    %v463 = vunpack.c.h.b16 %v372
    %v464 = vunpack.c.l.b16 %v373
    %v465 = vunpack.c.l.b16 %v374
    %v466 = vunpack.c.h.b16 %v374
    %v467 = vunpack.c.l.b16 %v375
    %v468 = vunpack.c.l.b16 %v376
    %v469 = vunpack.c.h.b16 %v376
    %v470 = vunpack.c.l.b16 %v377
    %v471 = vunpack.c.l.b16 %v378
    %v472 = vunpack.c.h.b16 %v378
    %v473 = vunpack.c.l.b16 %v379
    %v474 = vunpack.c.l.b16 %v380
    %v475 = vunpack.c.h.b16 %v380
    %v476 = vunpack.c.l.b16 %v381
    %v477 = vunpack.c.l.b16 %v382
    %v478 = vunpack.c.h.b16 %v382
    %v479 = vunpack.c.l.b16 %v383
    %v480 = vunpack.c.l.b16 %v384
    %v481 = vunpack.c.h.b16 %v384
    %v482 = vunpack.c.l.b16 %v385
    %v483 = vpack.c.b16 %v438, %v435
    %v484 = vpack.c.b16 %v439, %v436
    %v485 = vpack.c.b16 %v440, %v437
    %v486 = vpack.c.b16 %v444, %v441
    %v487 = vpack.c.b16 %v445, %v442
    %v488 = vpack.c.b16 %v446, %v443
    %v489 = vpack.c.b16 %v450, %v447
    %v490 = vpack.c.b16 %v451, %v448
    %v491 = vpack.c.b16 %v452, %v449
    %v492 = vpack.c.b16 %v456, %v453
    %v493 = vpack.c.b16 %v457, %v454
    %v494 = vpack.c.b16 %v458, %v455
    %v495 = vpack.c.b16 %v462, %v459
    %v496 = vpack.c.b16 %v463, %v460
    %v497 = vpack.c.b16 %v464, %v461
    %v498 = vpack.c.b16 %v468, %v465
    %v499 = vpack.c.b16 %v469, %v466
    %v500 = vpack.c.b16 %v470, %v467
    %v501 = vpack.c.b16 %v474, %v471
    %v502 = vpack.c.b16 %v475, %v472
    %v503 = vpack.c.b16 %v476, %v473
    %v504 = vpack.c.b16 %v480, %v477
    %v505 = vpack.c.b16 %v481, %v478
    %v506 = vpack.c.b16 %v482, %v479
    %531 = vmatprep.subr.bf16.mxu0 %v505
    %532 = vmatpush1.bf16.msra.mxu0 %v504
    %533 = vmatprep.subr.bf16.mxu0 %v502
    %534 = vmatpush1.bf16.msra.mxu0 %v501
    %535 = vmatprep.subr.bf16.mxu0 %v499
    %536 = vmatpush1.bf16.msra.mxu0 %v498
    %537 = vmatprep.subr.bf16.mxu0 %v496
    %538 = vmatpush1.bf16.msra.mxu0 %v495
    %539 = vmatprep.subr.bf16.mxu0 %v493
    %540 = vmatpush1.bf16.msra.mxu0 %v492
    %541 = vmatprep.subr.bf16.mxu0 %v490
    %542 = vmatpush1.bf16.msra.mxu0 %v489
    %543 = vmatprep.subr.bf16.mxu0 %v487
    %544 = vmatpush1.bf16.msra.mxu0 %v486
    %545 = vmatprep.subr.bf16.mxu0 %v484
    %546 = vmatpush1.bf16.msra.mxu0 %v483
    %547 = vmatprep.subr.bf16.mxu0 0
    %548 = vmatpush2.bf16.msra.mxu0 0
    %549 = vmatprep.subr.bf16.mxu0 0
    %550 = vmatpush2.bf16.msra.mxu0 0
    %551 = vmatprep.subr.bf16.mxu0 0
    %552 = vmatpush2.bf16.msra.mxu0 0
    %553 = vmatprep.subr.bf16.mxu0 0
    %554 = vmatpush2.bf16.msra.mxu0 0
    %555 = vmatprep.subr.bf16.mxu0 0
    %556 = vmatpush2.bf16.msra.mxu0 0
    %557 = vmatprep.subr.bf16.mxu0 0
    %558 = vmatpush2.bf16.msra.mxu0 0
    %559 = vmatprep.subr.bf16.mxu0 0
    %560 = vmatpush2.bf16.msra.mxu0 0
    %561 = vmatprep.subr.bf16.mxu0 0
    %562 = vmatpush2.bf16.msra.mxu0 0
    %563 = vmatprep.mubr.bf16.mxu0 0
    %564 = vmatmul.mubr.bf16.gmra.mxu0 %v350
    %v565 = vpop.f32.mrf.mxu0
    %v566 = vadd.f32 %v391, %v565
    %v567 = vpop.f32.mrf.mxu0
    %v568 = vadd.f32 %v395, %v567
    %v569 = vpop.f32.mrf.mxu0
    %v570 = vadd.f32 %v391, %v569
    %v571 = vpop.f32.mrf.mxu0
    %v572 = vadd.f32 %v395, %v571
    %573 = vmatprep.mubr.bf16.mxu0 0
    %574 = vmatmul.mubr.bf16.gmra.mxu0 %v351
    %v575 = vpop.f32.mrf.mxu0
    %v576 = vadd.f32 %v391, %v575
    %v577 = vpop.f32.mrf.mxu0
    %v578 = vadd.f32 %v395, %v577
    %v579 = vpop.f32.mrf.mxu0
    %v580 = vadd.f32 %v391, %v579
    %v581 = vpop.f32.mrf.mxu0
    %v582 = vadd.f32 %v395, %v581
    %583 = vmatprep.mubr.bf16.mxu0 0
    %584 = vmatmul.mubr.bf16.gmra.mxu0 %v352
    %v585 = vpop.f32.mrf.mxu0
    %v586 = vadd.f32 %v391, %v585
    %v587 = vpop.f32.mrf.mxu0
    %v588 = vadd.f32 %v395, %v587
    %v589 = vpop.f32.mrf.mxu0
    %v590 = vadd.f32 %v391, %v589
    %v591 = vpop.f32.mrf.mxu0
    %v592 = vadd.f32 %v395, %v591
    %593 = vmatprep.mubr.bf16.mxu0 0
    %594 = vmatmul.mubr.bf16.gmra.mxu0 %v353
    %v595 = vpop.f32.mrf.mxu0
    %v596 = vadd.f32 %v391, %v595
    %v597 = vpop.f32.mrf.mxu0
    %v598 = vadd.f32 %v395, %v597
    %v599 = vpop.f32.mrf.mxu0
    %v600 = vadd.f32 %v391, %v599
    %v601 = vpop.f32.mrf.mxu0
    %v602 = vadd.f32 %v395, %v601
    %603 = vdwg.mxu0
    %604 = vmatprep.subr.bf16.mxu0 0
    %605 = vmatpush1.bf16.msra.mxu0 %v506
    %606 = vmatprep.subr.bf16.mxu0 0
    %607 = vmatpush1.bf16.msra.mxu0 %v503
    %608 = vmatprep.subr.bf16.mxu0 0
    %609 = vmatpush1.bf16.msra.mxu0 %v500
    %610 = vmatprep.subr.bf16.mxu0 0
    %611 = vmatpush1.bf16.msra.mxu0 %v497
    %612 = vmatprep.subr.bf16.mxu0 0
    %613 = vmatpush1.bf16.msra.mxu0 %v494
    %614 = vmatprep.subr.bf16.mxu0 0
    %615 = vmatpush1.bf16.msra.mxu0 %v491
    %616 = vmatprep.subr.bf16.mxu0 0
    %617 = vmatpush1.bf16.msra.mxu0 %v488
    %618 = vmatprep.subr.bf16.mxu0 0
    %619 = vmatpush1.bf16.msra.mxu0 %v485
    %620 = vmatprep.subr.bf16.mxu0 0
    %621 = vmatpush2.bf16.msra.mxu0 0
    %622 = vmatprep.subr.bf16.mxu0 0
    %623 = vmatpush2.bf16.msra.mxu0 0
    %624 = vmatprep.subr.bf16.mxu0 0
    %625 = vmatpush2.bf16.msra.mxu0 0
    %626 = vmatprep.subr.bf16.mxu0 0
    %627 = vmatpush2.bf16.msra.mxu0 0
    %628 = vmatprep.subr.bf16.mxu0 0
    %629 = vmatpush2.bf16.msra.mxu0 0
    %630 = vmatprep.subr.bf16.mxu0 0
    %631 = vmatpush2.bf16.msra.mxu0 0
    %632 = vmatprep.subr.bf16.mxu0 0
    %633 = vmatpush2.bf16.msra.mxu0 0
    %634 = vmatprep.subr.bf16.mxu0 0
    %635 = vmatpush2.bf16.msra.mxu0 0
    %636 = vmatprep.mubr.bf16.mxu0 0
    %637 = vmatmul.mubr.bf16.gmra.mxu0 %v350
    %v638 = vpop.f32.mrf.mxu0
    %v639 = vadd.f32 %v399, %v638
    %v640 = vpop.f32.mrf.mxu0
    %v641 = vpop.f32.mrf.mxu0
    %v642 = vadd.f32 %v399, %v641
    %v643 = vpop.f32.mrf.mxu0
    %644 = vmatprep.mubr.bf16.mxu0 0
    %645 = vmatmul.mubr.bf16.gmra.mxu0 %v351
    %v646 = vpop.f32.mrf.mxu0
    %v647 = vadd.f32 %v399, %v646
    %v648 = vpop.f32.mrf.mxu0
    %v649 = vpop.f32.mrf.mxu0
    %v650 = vadd.f32 %v399, %v649
    %v651 = vpop.f32.mrf.mxu0
    %652 = vmatprep.mubr.bf16.mxu0 0
    %653 = vmatmul.mubr.bf16.gmra.mxu0 %v352
    %v654 = vpop.f32.mrf.mxu0
    %v655 = vadd.f32 %v399, %v654
    %v656 = vpop.f32.mrf.mxu0
    %v657 = vpop.f32.mrf.mxu0
    %v658 = vadd.f32 %v399, %v657
    %v659 = vpop.f32.mrf.mxu0
    %660 = vmatprep.mubr.bf16.mxu0 0
    %661 = vmatmul.mubr.bf16.gmra.mxu0 %v353
    %v662 = vpop.f32.mrf.mxu0
    %v663 = vadd.f32 %v399, %v662
    %v664 = vpop.f32.mrf.mxu0
    %v665 = vpop.f32.mrf.mxu0
    %v666 = vadd.f32 %v399, %v665
    %v667 = vpop.f32.mrf.mxu0
    %668 = vdwg.mxu0
    %v669 = vld [vmem:[#allocation10] sm:$0xff]
    %v670 = vld [vmem:[#allocation10 + $0x8] sm:$0xf]
    %v671 = vld [vmem:[#allocation10 + $0xc] sm:$0xff]
    %v672 = vld [vmem:[#allocation10 + $0x14] sm:$0xf]
    %v673 = vld [vmem:[#allocation10 + $0x18] sm:$0xff]
    %v674 = vld [vmem:[#allocation10 + $0x20] sm:$0xf]
    %v675 = vld [vmem:[#allocation10 + $0x24] sm:$0xff]
    %v676 = vld [vmem:[#allocation10 + $0x2c] sm:$0xf]
    %v677 = vld [vmem:[#allocation10 + $0x30] sm:$0xff]
    %v678 = vld [vmem:[#allocation10 + $0x38] sm:$0xf]
    %v679 = vld [vmem:[#allocation10 + $0x3c] sm:$0xff]
    %v680 = vld [vmem:[#allocation10 + $0x44] sm:$0xf]
    %v681 = vld [vmem:[#allocation10 + $0x48] sm:$0xff]
    %v682 = vld [vmem:[#allocation10 + $0x50] sm:$0xf]
    %v683 = vld [vmem:[#allocation10 + $0x54] sm:$0xff]
    %v684 = vld [vmem:[#allocation10 + $0x5c] sm:$0xf]
    %v685 = vld [vmem:[#allocation10 + $0x60] sm:$0xff]
    %v686 = vld [vmem:[#allocation10 + $0x68] sm:$0xf]
    %v687 = vld [vmem:[#allocation10 + $0x6c] sm:$0xff]
    %v688 = vld [vmem:[#allocation10 + $0x74] sm:$0xf]
    %v689 = vld [vmem:[#allocation10 + $0x78] sm:$0xff]
    %v690 = vld [vmem:[#allocation10 + $0x80] sm:$0xf]
    %v691 = vld [vmem:[#allocation10 + $0x84] sm:$0xff]
    %v692 = vld [vmem:[#allocation10 + $0x8c] sm:$0xf]
    %v693 = vld [vmem:[#allocation10 + $0x90] sm:$0xff]
    %v694 = vld [vmem:[#allocation10 + $0x98] sm:$0xf]
    %v695 = vld [vmem:[#allocation10 + $0x9c] sm:$0xff]
    %v696 = vld [vmem:[#allocation10 + $0xa4] sm:$0xf]
    %v697 = vld [vmem:[#allocation10 + $0xa8] sm:$0xff]
    %v698 = vld [vmem:[#allocation10 + $0xb0] sm:$0xf]
    %v699 = vld [vmem:[#allocation10 + $0xb4] sm:$0xff]
    %v700 = vld [vmem:[#allocation10 + $0xbc] sm:$0xf]
    %v701 = vld [vmem:[%s5] sm:$0x1]
    %v734 = vunpack.c.l.b16 %v669
    %v735 = vunpack.c.h.b16 %v669
    %v736 = vunpack.c.l.b16 %v670
    %v737 = vunpack.c.l.b16 %v671
    %v738 = vunpack.c.h.b16 %v671
    %v739 = vunpack.c.l.b16 %v672
    %v740 = vunpack.c.l.b16 %v673
    %v741 = vunpack.c.h.b16 %v673
    %v742 = vunpack.c.l.b16 %v674
    %v743 = vunpack.c.l.b16 %v675
    %v744 = vunpack.c.h.b16 %v675
    %v745 = vunpack.c.l.b16 %v676
    %v746 = vunpack.c.l.b16 %v677
    %v747 = vunpack.c.h.b16 %v677
    %v748 = vunpack.c.l.b16 %v678
    %v749 = vunpack.c.l.b16 %v679
    %v750 = vunpack.c.h.b16 %v679
    %v751 = vunpack.c.l.b16 %v680
    %v752 = vunpack.c.l.b16 %v681
    %v753 = vunpack.c.h.b16 %v681
    %v754 = vunpack.c.l.b16 %v682
    %v755 = vunpack.c.l.b16 %v683
    %v756 = vunpack.c.h.b16 %v683
    %v757 = vunpack.c.l.b16 %v684
    %v758 = vunpack.c.l.b16 %v685
    %v759 = vunpack.c.h.b16 %v685
    %v760 = vunpack.c.l.b16 %v686
    %v761 = vunpack.c.l.b16 %v687
    %v762 = vunpack.c.h.b16 %v687
    %v763 = vunpack.c.l.b16 %v688
    %v764 = vunpack.c.l.b16 %v689
    %v765 = vunpack.c.h.b16 %v689
    %v766 = vunpack.c.l.b16 %v690
    %v767 = vunpack.c.l.b16 %v691
    %v768 = vunpack.c.h.b16 %v691
    %v769 = vunpack.c.l.b16 %v692
    %v770 = vunpack.c.l.b16 %v693
    %v771 = vunpack.c.h.b16 %v693
    %v772 = vunpack.c.l.b16 %v694
    %v773 = vunpack.c.l.b16 %v695
    %v774 = vunpack.c.h.b16 %v695
    %v775 = vunpack.c.l.b16 %v696
    %v776 = vunpack.c.l.b16 %v697
    %v777 = vunpack.c.h.b16 %v697
    %v778 = vunpack.c.l.b16 %v698
    %v779 = vunpack.c.l.b16 %v699
    %v780 = vunpack.c.h.b16 %v699
    %v781 = vunpack.c.l.b16 %v700
    %v782 = vpack.c.b16 %v737, %v734
    %v783 = vpack.c.b16 %v738, %v735
    %v784 = vpack.c.b16 %v739, %v736
    %v785 = vpack.c.b16 %v743, %v740
    %v786 = vpack.c.b16 %v744, %v741
    %v787 = vpack.c.b16 %v745, %v742
    %v788 = vpack.c.b16 %v749, %v746
    %v789 = vpack.c.b16 %v750, %v747
    %v790 = vpack.c.b16 %v751, %v748
    %v791 = vpack.c.b16 %v755, %v752
    %v792 = vpack.c.b16 %v756, %v753
    %v793 = vpack.c.b16 %v757, %v754
    %v794 = vpack.c.b16 %v761, %v758
    %v795 = vpack.c.b16 %v762, %v759
    %v796 = vpack.c.b16 %v763, %v760
    %v797 = vpack.c.b16 %v767, %v764
    %v798 = vpack.c.b16 %v768, %v765
    %v799 = vpack.c.b16 %v769, %v766
    %v800 = vpack.c.b16 %v773, %v770
    %v801 = vpack.c.b16 %v774, %v771
    %v802 = vpack.c.b16 %v775, %v772
    %v803 = vpack.c.b16 %v779, %v776
    %v804 = vpack.c.b16 %v780, %v777
    %v805 = vpack.c.b16 %v781, %v778
    %830 = vmatprep.subr.bf16.mxu0 %v804
    %831 = vmatpush1.bf16.msra.mxu0 %v803
    %832 = vmatprep.subr.bf16.mxu0 %v801
    %833 = vmatpush1.bf16.msra.mxu0 %v800
    %834 = vmatprep.subr.bf16.mxu0 %v798
    %835 = vmatpush1.bf16.msra.mxu0 %v797
    %836 = vmatprep.subr.bf16.mxu0 %v795
    %837 = vmatpush1.bf16.msra.mxu0 %v794
    %838 = vmatprep.subr.bf16.mxu0 %v792
    %839 = vmatpush1.bf16.msra.mxu0 %v791
    %840 = vmatprep.subr.bf16.mxu0 %v789
    %841 = vmatpush1.bf16.msra.mxu0 %v788
    %842 = vmatprep.subr.bf16.mxu0 %v786
    %843 = vmatpush1.bf16.msra.mxu0 %v785
    %844 = vmatprep.subr.bf16.mxu0 %v783
    %845 = vmatpush1.bf16.msra.mxu0 %v782
    %846 = vmatprep.subr.bf16.mxu0 0
    %847 = vmatpush2.bf16.msra.mxu0 0
    %848 = vmatprep.subr.bf16.mxu0 0
    %849 = vmatpush2.bf16.msra.mxu0 0
    %850 = vmatprep.subr.bf16.mxu0 0
    %851 = vmatpush2.bf16.msra.mxu0 0
    %852 = vmatprep.subr.bf16.mxu0 0
    %853 = vmatpush2.bf16.msra.mxu0 0
    %854 = vmatprep.subr.bf16.mxu0 0
    %855 = vmatpush2.bf16.msra.mxu0 0
    %856 = vmatprep.subr.bf16.mxu0 0
    %857 = vmatpush2.bf16.msra.mxu0 0
    %858 = vmatprep.subr.bf16.mxu0 0
    %859 = vmatpush2.bf16.msra.mxu0 0
    %860 = vmatprep.subr.bf16.mxu0 0
    %861 = vmatpush2.bf16.msra.mxu0 0
    %862 = vmatprep.mubr.bf16.mxu0 0
    %863 = vmatmul.mubr.bf16.gmra.mxu0 0
    %v864 = vpop.f32.mrf.mxu0
    %v865 = vadd.f32 0.0, %v864
    %v866 = vpop.f32.mrf.mxu0
    %v867 = vadd.f32 0.0, %v866
    %v868 = vpop.f32.mrf.mxu0
    %v869 = vpop.f32.mrf.mxu0
    %870 = vdwg.mxu0
    %871 = vmatprep.subr.bf16.mxu0 0
    %872 = vmatpush1.bf16.msra.mxu0 %v805
    %873 = vmatprep.subr.bf16.mxu0 0
    %874 = vmatpush1.bf16.msra.mxu0 %v802
    %875 = vmatprep.subr.bf16.mxu0 0
    %876 = vmatpush1.bf16.msra.mxu0 %v799
    %877 = vmatprep.subr.bf16.mxu0 0
    %878 = vmatpush1.bf16.msra.mxu0 %v796
    %879 = vmatprep.subr.bf16.mxu0 0
    %880 = vmatpush1.bf16.msra.mxu0 %v793
    %881 = vmatprep.subr.bf16.mxu0 0
    %882 = vmatpush1.bf16.msra.mxu0 %v790
    %883 = vmatprep.subr.bf16.mxu0 0
    %884 = vmatpush1.bf16.msra.mxu0 %v787
    %885 = vmatprep.subr.bf16.mxu0 0
    %886 = vmatpush1.bf16.msra.mxu0 %v784
    %887 = vmatprep.subr.bf16.mxu0 0
    %888 = vmatpush2.bf16.msra.mxu0 0
    %889 = vmatprep.subr.bf16.mxu0 0
    %890 = vmatpush2.bf16.msra.mxu0 0
    %891 = vmatprep.subr.bf16.mxu0 0
    %892 = vmatpush2.bf16.msra.mxu0 0
    %893 = vmatprep.subr.bf16.mxu0 0
    %894 = vmatpush2.bf16.msra.mxu0 0
    %895 = vmatprep.subr.bf16.mxu0 0
    %896 = vmatpush2.bf16.msra.mxu0 0
    %897 = vmatprep.subr.bf16.mxu0 0
    %898 = vmatpush2.bf16.msra.mxu0 0
    %899 = vmatprep.subr.bf16.mxu0 0
    %900 = vmatpush2.bf16.msra.mxu0 0
    %901 = vmatprep.subr.bf16.mxu0 0
    %902 = vmatpush2.bf16.msra.mxu0 0
    %903 = vmatprep.mubr.bf16.mxu0 0
    %904 = vmatmul.mubr.bf16.gmra.mxu0 0
    %v905 = vpop.f32.mrf.mxu0
    %v906 = vadd.f32 0.0, %v905
    %v907 = vpop.f32.mrf.mxu0
    %v908 = vpop.f32.mrf.mxu0
    %v909 = vpop.f32.mrf.mxu0
    %910 = vdwg.mxu0
    %v911 = vadd.f32 %v566, %v865
    %v912 = vxor.u32 %v911, 2147483648
    %v913 = vmul.f32 %v912, 1.442695
    %v914 = vpow.pop %v913
    %v915 = vadd.f32 %v914, 1.0
    %v916 = vrcp.pop %v915
    %v917 = vmul.f32 1.0, %v916
    %v918 = vadd.f32 %v568, %v867
    %v919 = vxor.u32 %v918, 2147483648
    %v920 = vmul.f32 %v919, 1.442695
    %v921 = vpow.pop %v920
    %v922 = vadd.f32 %v921, 1.0
    %v923 = vrcp.pop %v922
    %v924 = vmul.f32 1.0, %v923
    %v926 = vlaneseq
    %v927 = vshrl.u32 %v926, 7
    %v928 = vsub.s32 0, %v927
    %v929 = vrot.slane %v701, %v928
    %v931 = vadd.f32 %v906, %v929
    %v932 = vmul.f32 %v917, %v931
    %v933 = vadd.f32 %v639, %v932
    %v934 = vtanh.pop %v933
    %v935 = vsub.f32 0.0, %v934
    %v936 = vmul.f32 %v924, %v935
    %v937 = vadd.f32 %v934, %v936
    %v938 = vpack.c.bf16 %v937, %v937
    %939 = vmatprep.subr.bf16.mxu0 %v804
    %940 = vmatpush1.bf16.msra.mxu0 %v803
    %941 = vmatprep.subr.bf16.mxu0 %v801
    %942 = vmatpush1.bf16.msra.mxu0 %v800
    %943 = vmatprep.subr.bf16.mxu0 %v798
    %944 = vmatpush1.bf16.msra.mxu0 %v797
    %945 = vmatprep.subr.bf16.mxu0 %v795
    %946 = vmatpush1.bf16.msra.mxu0 %v794
    %947 = vmatprep.subr.bf16.mxu0 %v792
    %948 = vmatpush1.bf16.msra.mxu0 %v791
    %949 = vmatprep.subr.bf16.mxu0 %v789
    %950 = vmatpush1.bf16.msra.mxu0 %v788
    %951 = vmatprep.subr.bf16.mxu0 %v786
    %952 = vmatpush1.bf16.msra.mxu0 %v785
    %953 = vmatprep.subr.bf16.mxu0 %v783
    %954 = vmatpush1.bf16.msra.mxu0 %v782
    %955 = vmatprep.subr.bf16.mxu0 0
    %956 = vmatpush2.bf16.msra.mxu0 0
    %957 = vmatprep.subr.bf16.mxu0 0
    %958 = vmatpush2.bf16.msra.mxu0 0
    %959 = vmatprep.subr.bf16.mxu0 0
    %960 = vmatpush2.bf16.msra.mxu0 0
    %961 = vmatprep.subr.bf16.mxu0 0
    %962 = vmatpush2.bf16.msra.mxu0 0
    %963 = vmatprep.subr.bf16.mxu0 0
    %964 = vmatpush2.bf16.msra.mxu0 0
    %965 = vmatprep.subr.bf16.mxu0 0
    %966 = vmatpush2.bf16.msra.mxu0 0
    %967 = vmatprep.subr.bf16.mxu0 0
    %968 = vmatpush2.bf16.msra.mxu0 0
    %969 = vmatprep.subr.bf16.mxu0 0
    %970 = vmatpush2.bf16.msra.mxu0 0
    %971 = vmatprep.mubr.bf16.mxu0 0
    %972 = vmatmul.mubr.bf16.gmra.mxu0 %v938
    %v973 = vpop.f32.mrf.mxu0
    %v974 = vadd.f32 0.0, %v973
    %v975 = vpop.f32.mrf.mxu0
    %v976 = vadd.f32 0.0, %v975
    %v977 = vpop.f32.mrf.mxu0
    %v978 = vpop.f32.mrf.mxu0
    %979 = vdwg.mxu0
    %980 = vmatprep.subr.bf16.mxu0 0
    %981 = vmatpush1.bf16.msra.mxu0 %v805
    %982 = vmatprep.subr.bf16.mxu0 0
    %983 = vmatpush1.bf16.msra.mxu0 %v802
    %984 = vmatprep.subr.bf16.mxu0 0
    %985 = vmatpush1.bf16.msra.mxu0 %v799
    %986 = vmatprep.subr.bf16.mxu0 0
    %987 = vmatpush1.bf16.msra.mxu0 %v796
    %988 = vmatprep.subr.bf16.mxu0 0
    %989 = vmatpush1.bf16.msra.mxu0 %v793
    %990 = vmatprep.subr.bf16.mxu0 0
    %991 = vmatpush1.bf16.msra.mxu0 %v790
    %992 = vmatprep.subr.bf16.mxu0 0
    %993 = vmatpush1.bf16.msra.mxu0 %v787
    %994 = vmatprep.subr.bf16.mxu0 0
    %995 = vmatpush1.bf16.msra.mxu0 %v784
    %996 = vmatprep.subr.bf16.mxu0 0
    %997 = vmatpush2.bf16.msra.mxu0 0
    %998 = vmatprep.subr.bf16.mxu0 0
    %999 = vmatpush2.bf16.msra.mxu0 0
    %1000 = vmatprep.subr.bf16.mxu0 0
    %1001 = vmatpush2.bf16.msra.mxu0 0
    %1002 = vmatprep.subr.bf16.mxu0 0
    %1003 = vmatpush2.bf16.msra.mxu0 0
    %1004 = vmatprep.subr.bf16.mxu0 0
    %1005 = vmatpush2.bf16.msra.mxu0 0
    %1006 = vmatprep.subr.bf16.mxu0 0
    %1007 = vmatpush2.bf16.msra.mxu0 0
    %1008 = vmatprep.subr.bf16.mxu0 0
    %1009 = vmatpush2.bf16.msra.mxu0 0
    %1010 = vmatprep.subr.bf16.mxu0 0
    %1011 = vmatpush2.bf16.msra.mxu0 0
    %1012 = vmatprep.mubr.bf16.mxu0 0
    %1013 = vmatmul.mubr.bf16.gmra.mxu0 %v938
    %v1014 = vpop.f32.mrf.mxu0
    %v1015 = vadd.f32 0.0, %v1014
    %v1016 = vpop.f32.mrf.mxu0
    %v1017 = vpop.f32.mrf.mxu0
    %v1018 = vpop.f32.mrf.mxu0
    %1019 = vdwg.mxu0
    %v1020 = vadd.f32 %v570, %v974
    %v1021 = vxor.u32 %v1020, 2147483648
    %v1022 = vmul.f32 %v1021, 1.442695
    %v1023 = vpow.pop %v1022
    %v1024 = vadd.f32 %v1023, 1.0
    %v1025 = vrcp.pop %v1024
    %v1026 = vmul.f32 1.0, %v1025
    %v1027 = vadd.f32 %v572, %v976
    %v1028 = vxor.u32 %v1027, 2147483648
    %v1029 = vmul.f32 %v1028, 1.442695
    %v1030 = vpow.pop %v1029
    %v1031 = vadd.f32 %v1030, 1.0
    %v1032 = vrcp.pop %v1031
    %v1033 = vmul.f32 1.0, %v1032
    %v1034 = vadd.f32 %v1015, %v929
    %v1035 = vmul.f32 %v1026, %v1034
    %v1036 = vadd.f32 %v642, %v1035
    %v1037 = vtanh.pop %v1036
    %v1038 = vsub.f32 %v937, %v1037
    %v1039 = vmul.f32 %v1033, %v1038
    %v1040 = vadd.f32 %v1037, %v1039
    %v1041 = vpack.c.bf16 %v1040, %v1040
    %1042 = vmatprep.subr.bf16.mxu0 %v804
    %1043 = vmatpush1.bf16.msra.mxu0 %v803
    %1044 = vmatprep.subr.bf16.mxu0 %v801
    %1045 = vmatpush1.bf16.msra.mxu0 %v800
    %1046 = vmatprep.subr.bf16.mxu0 %v798
    %1047 = vmatpush1.bf16.msra.mxu0 %v797
    %1048 = vmatprep.subr.bf16.mxu0 %v795
    %1049 = vmatpush1.bf16.msra.mxu0 %v794
    %1050 = vmatprep.subr.bf16.mxu0 %v792
    %1051 = vmatpush1.bf16.msra.mxu0 %v791
    %1052 = vmatprep.subr.bf16.mxu0 %v789
    %1053 = vmatpush1.bf16.msra.mxu0 %v788
    %1054 = vmatprep.subr.bf16.mxu0 %v786
    %1055 = vmatpush1.bf16.msra.mxu0 %v785
    %1056 = vmatprep.subr.bf16.mxu0 %v783
    %1057 = vmatpush1.bf16.msra.mxu0 %v782
    %1058 = vmatprep.subr.bf16.mxu0 0
    %1059 = vmatpush2.bf16.msra.mxu0 0
    %1060 = vmatprep.subr.bf16.mxu0 0
    %1061 = vmatpush2.bf16.msra.mxu0 0
    %1062 = vmatprep.subr.bf16.mxu0 0
    %1063 = vmatpush2.bf16.msra.mxu0 0
    %1064 = vmatprep.subr.bf16.mxu0 0
    %1065 = vmatpush2.bf16.msra.mxu0 0
    %1066 = vmatprep.subr.bf16.mxu0 0
    %1067 = vmatpush2.bf16.msra.mxu0 0
    %1068 = vmatprep.subr.bf16.mxu0 0
    %1069 = vmatpush2.bf16.msra.mxu0 0
    %1070 = vmatprep.subr.bf16.mxu0 0
    %1071 = vmatpush2.bf16.msra.mxu0 0
    %1072 = vmatprep.subr.bf16.mxu0 0
    %1073 = vmatpush2.bf16.msra.mxu0 0
    %1074 = vmatprep.mubr.bf16.mxu0 0
    %1075 = vmatmul.mubr.bf16.gmra.mxu0 %v1041
    %v1076 = vpop.f32.mrf.mxu0
    %v1077 = vadd.f32 0.0, %v1076
    %v1078 = vpop.f32.mrf.mxu0
    %v1079 = vadd.f32 0.0, %v1078
    %v1080 = vpop.f32.mrf.mxu0
    %v1081 = vpop.f32.mrf.mxu0
    %1082 = vdwg.mxu0
    %1083 = vmatprep.subr.bf16.mxu0 0
    %1084 = vmatpush1.bf16.msra.mxu0 %v805
    %1085 = vmatprep.subr.bf16.mxu0 0
    %1086 = vmatpush1.bf16.msra.mxu0 %v802
    %1087 = vmatprep.subr.bf16.mxu0 0
    %1088 = vmatpush1.bf16.msra.mxu0 %v799
    %1089 = vmatprep.subr.bf16.mxu0 0
    %1090 = vmatpush1.bf16.msra.mxu0 %v796
    %1091 = vmatprep.subr.bf16.mxu0 0
    %1092 = vmatpush1.bf16.msra.mxu0 %v793
    %1093 = vmatprep.subr.bf16.mxu0 0
    %1094 = vmatpush1.bf16.msra.mxu0 %v790
    %1095 = vmatprep.subr.bf16.mxu0 0
    %1096 = vmatpush1.bf16.msra.mxu0 %v787
    %1097 = vmatprep.subr.bf16.mxu0 0
    %1098 = vmatpush1.bf16.msra.mxu0 %v784
    %1099 = vmatprep.subr.bf16.mxu0 0
    %1100 = vmatpush2.bf16.msra.mxu0 0
    %1101 = vmatprep.subr.bf16.mxu0 0
    %1102 = vmatpush2.bf16.msra.mxu0 0
    %1103 = vmatprep.subr.bf16.mxu0 0
    %1104 = vmatpush2.bf16.msra.mxu0 0
    %1105 = vmatprep.subr.bf16.mxu0 0
    %1106 = vmatpush2.bf16.msra.mxu0 0
    %1107 = vmatprep.subr.bf16.mxu0 0
    %1108 = vmatpush2.bf16.msra.mxu0 0
    %1109 = vmatprep.subr.bf16.mxu0 0
    %1110 = vmatpush2.bf16.msra.mxu0 0
    %1111 = vmatprep.subr.bf16.mxu0 0
    %1112 = vmatpush2.bf16.msra.mxu0 0
    %1113 = vmatprep.subr.bf16.mxu0 0
    %1114 = vmatpush2.bf16.msra.mxu0 0
    %1115 = vmatprep.mubr.bf16.mxu0 0
    %1116 = vmatmul.mubr.bf16.gmra.mxu0 %v1041
    %v1117 = vpop.f32.mrf.mxu0
    %v1118 = vadd.f32 0.0, %v1117
    %v1119 = vpop.f32.mrf.mxu0
    %v1120 = vpop.f32.mrf.mxu0
    %v1121 = vpop.f32.mrf.mxu0
    %1122 = vdwg.mxu0
    %v1123 = vadd.f32 %v576, %v1077
    %v1124 = vxor.u32 %v1123, 2147483648
    %v1125 = vmul.f32 %v1124, 1.442695
    %v1126 = vpow.pop %v1125
    %v1127 = vadd.f32 %v1126, 1.0
    %v1128 = vrcp.pop %v1127
    %v1129 = vmul.f32 1.0, %v1128
    %v1130 = vadd.f32 %v578, %v1079
    %v1131 = vxor.u32 %v1130, 2147483648
    %v1132 = vmul.f32 %v1131, 1.442695
    %v1133 = vpow.pop %v1132
    %v1134 = vadd.f32 %v1133, 1.0
    %v1135 = vrcp.pop %v1134
    %v1136 = vmul.f32 1.0, %v1135
    %v1137 = vadd.f32 %v1118, %v929
    %v1138 = vmul.f32 %v1129, %v1137
    %v1139 = vadd.f32 %v647, %v1138
    %v1140 = vtanh.pop %v1139
    %v1141 = vsub.f32 %v1040, %v1140
    %v1142 = vmul.f32 %v1136, %v1141
    %v1143 = vadd.f32 %v1140, %v1142
    %v1144 = vpack.c.bf16 %v1143, %v1143
    %1145 = vmatprep.subr.bf16.mxu0 %v804
    %1146 = vmatpush1.bf16.msra.mxu0 %v803
    %1147 = vmatprep.subr.bf16.mxu0 %v801
    %1148 = vmatpush1.bf16.msra.mxu0 %v800
    %1149 = vmatprep.subr.bf16.mxu0 %v798
    %1150 = vmatpush1.bf16.msra.mxu0 %v797
    %1151 = vmatprep.subr.bf16.mxu0 %v795
    %1152 = vmatpush1.bf16.msra.mxu0 %v794
    %1153 = vmatprep.subr.bf16.mxu0 %v792
    %1154 = vmatpush1.bf16.msra.mxu0 %v791
    %1155 = vmatprep.subr.bf16.mxu0 %v789
    %1156 = vmatpush1.bf16.msra.mxu0 %v788
    %1157 = vmatprep.subr.bf16.mxu0 %v786
    %1158 = vmatpush1.bf16.msra.mxu0 %v785
    %1159 = vmatprep.subr.bf16.mxu0 %v783
    %1160 = vmatpush1.bf16.msra.mxu0 %v782
    %1161 = vmatprep.subr.bf16.mxu0 0
    %1162 = vmatpush2.bf16.msra.mxu0 0
    %1163 = vmatprep.subr.bf16.mxu0 0
    %1164 = vmatpush2.bf16.msra.mxu0 0
    %1165 = vmatprep.subr.bf16.mxu0 0
    %1166 = vmatpush2.bf16.msra.mxu0 0
    %1167 = vmatprep.subr.bf16.mxu0 0
    %1168 = vmatpush2.bf16.msra.mxu0 0
    %1169 = vmatprep.subr.bf16.mxu0 0
    %1170 = vmatpush2.bf16.msra.mxu0 0
    %1171 = vmatprep.subr.bf16.mxu0 0
    %1172 = vmatpush2.bf16.msra.mxu0 0
    %1173 = vmatprep.subr.bf16.mxu0 0
    %1174 = vmatpush2.bf16.msra.mxu0 0
    %1175 = vmatprep.subr.bf16.mxu0 0
    %1176 = vmatpush2.bf16.msra.mxu0 0
    %1177 = vmatprep.mubr.bf16.mxu0 0
    %1178 = vmatmul.mubr.bf16.gmra.mxu0 %v1144
    %v1179 = vpop.f32.mrf.mxu0
    %v1180 = vadd.f32 0.0, %v1179
    %v1181 = vpop.f32.mrf.mxu0
    %v1182 = vadd.f32 0.0, %v1181
    %v1183 = vpop.f32.mrf.mxu0
    %v1184 = vpop.f32.mrf.mxu0
    %1185 = vdwg.mxu0
    %1186 = vmatprep.subr.bf16.mxu0 0
    %1187 = vmatpush1.bf16.msra.mxu0 %v805
    %1188 = vmatprep.subr.bf16.mxu0 0
    %1189 = vmatpush1.bf16.msra.mxu0 %v802
    %1190 = vmatprep.subr.bf16.mxu0 0
    %1191 = vmatpush1.bf16.msra.mxu0 %v799
    %1192 = vmatprep.subr.bf16.mxu0 0
    %1193 = vmatpush1.bf16.msra.mxu0 %v796
    %1194 = vmatprep.subr.bf16.mxu0 0
    %1195 = vmatpush1.bf16.msra.mxu0 %v793
    %1196 = vmatprep.subr.bf16.mxu0 0
    %1197 = vmatpush1.bf16.msra.mxu0 %v790
    %1198 = vmatprep.subr.bf16.mxu0 0
    %1199 = vmatpush1.bf16.msra.mxu0 %v787
    %1200 = vmatprep.subr.bf16.mxu0 0
    %1201 = vmatpush1.bf16.msra.mxu0 %v784
    %1202 = vmatprep.subr.bf16.mxu0 0
    %1203 = vmatpush2.bf16.msra.mxu0 0
    %1204 = vmatprep.subr.bf16.mxu0 0
    %1205 = vmatpush2.bf16.msra.mxu0 0
    %1206 = vmatprep.subr.bf16.mxu0 0
    %1207 = vmatpush2.bf16.msra.mxu0 0
    %1208 = vmatprep.subr.bf16.mxu0 0
    %1209 = vmatpush2.bf16.msra.mxu0 0
    %1210 = vmatprep.subr.bf16.mxu0 0
    %1211 = vmatpush2.bf16.msra.mxu0 0
    %1212 = vmatprep.subr.bf16.mxu0 0
    %1213 = vmatpush2.bf16.msra.mxu0 0
    %1214 = vmatprep.subr.bf16.mxu0 0
    %1215 = vmatpush2.bf16.msra.mxu0 0
    %1216 = vmatprep.subr.bf16.mxu0 0
    %1217 = vmatpush2.bf16.msra.mxu0 0
    %1218 = vmatprep.mubr.bf16.mxu0 0
    %1219 = vmatmul.mubr.bf16.gmra.mxu0 %v1144
    %v1220 = vpop.f32.mrf.mxu0
    %v1221 = vadd.f32 0.0, %v1220
    %v1222 = vpop.f32.mrf.mxu0
    %v1223 = vpop.f32.mrf.mxu0
    %v1224 = vpop.f32.mrf.mxu0
    %1225 = vdwg.mxu0
    %v1226 = vadd.f32 %v580, %v1180
    %v1227 = vxor.u32 %v1226, 2147483648
    %v1228 = vmul.f32 %v1227, 1.442695
    %v1229 = vpow.pop %v1228
    %v1230 = vadd.f32 %v1229, 1.0
    %v1231 = vrcp.pop %v1230
    %v1232 = vmul.f32 1.0, %v1231
    %v1233 = vadd.f32 %v582, %v1182
    %v1234 = vxor.u32 %v1233, 2147483648
    %v1235 = vmul.f32 %v1234, 1.442695
    %v1236 = vpow.pop %v1235
    %v1237 = vadd.f32 %v1236, 1.0
    %v1238 = vrcp.pop %v1237
    %v1239 = vmul.f32 1.0, %v1238
    %v1240 = vadd.f32 %v1221, %v929
    %v1241 = vmul.f32 %v1232, %v1240
    %v1242 = vadd.f32 %v650, %v1241
    %v1243 = vtanh.pop %v1242
    %v1244 = vsub.f32 %v1143, %v1243
    %v1245 = vmul.f32 %v1239, %v1244
    %v1246 = vadd.f32 %v1243, %v1245
    %v1247 = vpack.c.bf16 %v1246, %v1246
    %1248 = vmatprep.subr.bf16.mxu0 %v804
    %1249 = vmatpush1.bf16.msra.mxu0 %v803
    %1250 = vmatprep.subr.bf16.mxu0 %v801
    %1251 = vmatpush1.bf16.msra.mxu0 %v800
    %1252 = vmatprep.subr.bf16.mxu0 %v798
    %1253 = vmatpush1.bf16.msra.mxu0 %v797
    %1254 = vmatprep.subr.bf16.mxu0 %v795
    %1255 = vmatpush1.bf16.msra.mxu0 %v794
    %1256 = vmatprep.subr.bf16.mxu0 %v792
    %1257 = vmatpush1.bf16.msra.mxu0 %v791
    %1258 = vmatprep.subr.bf16.mxu0 %v789
    %1259 = vmatpush1.bf16.msra.mxu0 %v788
    %1260 = vmatprep.subr.bf16.mxu0 %v786
    %1261 = vmatpush1.bf16.msra.mxu0 %v785
    %1262 = vmatprep.subr.bf16.mxu0 %v783
    %1263 = vmatpush1.bf16.msra.mxu0 %v782
    %1264 = vmatprep.subr.bf16.mxu0 0
    %1265 = vmatpush2.bf16.msra.mxu0 0
    %1266 = vmatprep.subr.bf16.mxu0 0
    %1267 = vmatpush2.bf16.msra.mxu0 0
    %1268 = vmatprep.subr.bf16.mxu0 0
    %1269 = vmatpush2.bf16.msra.mxu0 0
    %1270 = vmatprep.subr.bf16.mxu0 0
    %1271 = vmatpush2.bf16.msra.mxu0 0
    %1272 = vmatprep.subr.bf16.mxu0 0
    %1273 = vmatpush2.bf16.msra.mxu0 0
    %1274 = vmatprep.subr.bf16.mxu0 0
    %1275 = vmatpush2.bf16.msra.mxu0 0
    %1276 = vmatprep.subr.bf16.mxu0 0
    %1277 = vmatpush2.bf16.msra.mxu0 0
    %1278 = vmatprep.subr.bf16.mxu0 0
    %1279 = vmatpush2.bf16.msra.mxu0 0
    %1280 = vmatprep.mubr.bf16.mxu0 0
    %1281 = vmatmul.mubr.bf16.gmra.mxu0 %v1247
    %v1282 = vpop.f32.mrf.mxu0
    %v1283 = vadd.f32 0.0, %v1282
    %v1284 = vpop.f32.mrf.mxu0
    %v1285 = vadd.f32 0.0, %v1284
    %v1286 = vpop.f32.mrf.mxu0
    %v1287 = vpop.f32.mrf.mxu0
    %1288 = vdwg.mxu0
    %1289 = vmatprep.subr.bf16.mxu0 0
    %1290 = vmatpush1.bf16.msra.mxu0 %v805
    %1291 = vmatprep.subr.bf16.mxu0 0
    %1292 = vmatpush1.bf16.msra.mxu0 %v802
    %1293 = vmatprep.subr.bf16.mxu0 0
    %1294 = vmatpush1.bf16.msra.mxu0 %v799
    %1295 = vmatprep.subr.bf16.mxu0 0
    %1296 = vmatpush1.bf16.msra.mxu0 %v796
    %1297 = vmatprep.subr.bf16.mxu0 0
    %1298 = vmatpush1.bf16.msra.mxu0 %v793
    %1299 = vmatprep.subr.bf16.mxu0 0
    %1300 = vmatpush1.bf16.msra.mxu0 %v790
    %1301 = vmatprep.subr.bf16.mxu0 0
    %1302 = vmatpush1.bf16.msra.mxu0 %v787
    %1303 = vmatprep.subr.bf16.mxu0 0
    %1304 = vmatpush1.bf16.msra.mxu0 %v784
    %1305 = vmatprep.subr.bf16.mxu0 0
    %1306 = vmatpush2.bf16.msra.mxu0 0
    %1307 = vmatprep.subr.bf16.mxu0 0
    %1308 = vmatpush2.bf16.msra.mxu0 0
    %1309 = vmatprep.subr.bf16.mxu0 0
    %1310 = vmatpush2.bf16.msra.mxu0 0
    %1311 = vmatprep.subr.bf16.mxu0 0
    %1312 = vmatpush2.bf16.msra.mxu0 0
    %1313 = vmatprep.subr.bf16.mxu0 0
    %1314 = vmatpush2.bf16.msra.mxu0 0
    %1315 = vmatprep.subr.bf16.mxu0 0
    %1316 = vmatpush2.bf16.msra.mxu0 0
    %1317 = vmatprep.subr.bf16.mxu0 0
    %1318 = vmatpush2.bf16.msra.mxu0 0
    %1319 = vmatprep.subr.bf16.mxu0 0
    %1320 = vmatpush2.bf16.msra.mxu0 0
    %1321 = vmatprep.mubr.bf16.mxu0 0
    %1322 = vmatmul.mubr.bf16.gmra.mxu0 %v1247
    %v1323 = vpop.f32.mrf.mxu0
    %v1324 = vadd.f32 0.0, %v1323
    %v1325 = vpop.f32.mrf.mxu0
    %v1326 = vpop.f32.mrf.mxu0
    %v1327 = vpop.f32.mrf.mxu0
    %1328 = vdwg.mxu0
    %v1329 = vadd.f32 %v586, %v1283
    %v1330 = vxor.u32 %v1329, 2147483648
    %v1331 = vmul.f32 %v1330, 1.442695
    %v1332 = vpow.pop %v1331
    %v1333 = vadd.f32 %v1332, 1.0
    %v1334 = vrcp.pop %v1333
    %v1335 = vmul.f32 1.0, %v1334
    %v1336 = vadd.f32 %v588, %v1285
    %v1337 = vxor.u32 %v1336, 2147483648
    %v1338 = vmul.f32 %v1337, 1.442695
    %v1339 = vpow.pop %v1338
    %v1340 = vadd.f32 %v1339, 1.0
    %v1341 = vrcp.pop %v1340
    %v1342 = vmul.f32 1.0, %v1341
    %v1343 = vadd.f32 %v1324, %v929
    %v1344 = vmul.f32 %v1335, %v1343
    %v1345 = vadd.f32 %v655, %v1344
    %v1346 = vtanh.pop %v1345
    %v1347 = vsub.f32 %v1246, %v1346
    %v1348 = vmul.f32 %v1342, %v1347
    %v1349 = vadd.f32 %v1346, %v1348
    %v1350 = vpack.c.bf16 %v1349, %v1349
    %1351 = vmatprep.subr.bf16.mxu0 %v804
    %1352 = vmatpush1.bf16.msra.mxu0 %v803
    %1353 = vmatprep.subr.bf16.mxu0 %v801
    %1354 = vmatpush1.bf16.msra.mxu0 %v800
    %1355 = vmatprep.subr.bf16.mxu0 %v798
    %1356 = vmatpush1.bf16.msra.mxu0 %v797
    %1357 = vmatprep.subr.bf16.mxu0 %v795
    %1358 = vmatpush1.bf16.msra.mxu0 %v794
    %1359 = vmatprep.subr.bf16.mxu0 %v792
    %1360 = vmatpush1.bf16.msra.mxu0 %v791
    %1361 = vmatprep.subr.bf16.mxu0 %v789
    %1362 = vmatpush1.bf16.msra.mxu0 %v788
    %1363 = vmatprep.subr.bf16.mxu0 %v786
    %1364 = vmatpush1.bf16.msra.mxu0 %v785
    %1365 = vmatprep.subr.bf16.mxu0 %v783
    %1366 = vmatpush1.bf16.msra.mxu0 %v782
    %1367 = vmatprep.subr.bf16.mxu0 0
    %1368 = vmatpush2.bf16.msra.mxu0 0
    %1369 = vmatprep.subr.bf16.mxu0 0
    %1370 = vmatpush2.bf16.msra.mxu0 0
    %1371 = vmatprep.subr.bf16.mxu0 0
    %1372 = vmatpush2.bf16.msra.mxu0 0
    %1373 = vmatprep.subr.bf16.mxu0 0
    %1374 = vmatpush2.bf16.msra.mxu0 0
    %1375 = vmatprep.subr.bf16.mxu0 0
    %1376 = vmatpush2.bf16.msra.mxu0 0
    %1377 = vmatprep.subr.bf16.mxu0 0
    %1378 = vmatpush2.bf16.msra.mxu0 0
    %1379 = vmatprep.subr.bf16.mxu0 0
    %1380 = vmatpush2.bf16.msra.mxu0 0
    %1381 = vmatprep.subr.bf16.mxu0 0
    %1382 = vmatpush2.bf16.msra.mxu0 0
    %1383 = vmatprep.mubr.bf16.mxu0 0
    %1384 = vmatmul.mubr.bf16.gmra.mxu0 %v1350
    %v1385 = vpop.f32.mrf.mxu0
    %v1386 = vadd.f32 0.0, %v1385
    %v1387 = vpop.f32.mrf.mxu0
    %v1388 = vadd.f32 0.0, %v1387
    %v1389 = vpop.f32.mrf.mxu0
    %v1390 = vpop.f32.mrf.mxu0
    %1391 = vdwg.mxu0
    %1392 = vmatprep.subr.bf16.mxu0 0
    %1393 = vmatpush1.bf16.msra.mxu0 %v805
    %1394 = vmatprep.subr.bf16.mxu0 0
    %1395 = vmatpush1.bf16.msra.mxu0 %v802
    %1396 = vmatprep.subr.bf16.mxu0 0
    %1397 = vmatpush1.bf16.msra.mxu0 %v799
    %1398 = vmatprep.subr.bf16.mxu0 0
    %1399 = vmatpush1.bf16.msra.mxu0 %v796
    %1400 = vmatprep.subr.bf16.mxu0 0
    %1401 = vmatpush1.bf16.msra.mxu0 %v793
    %1402 = vmatprep.subr.bf16.mxu0 0
    %1403 = vmatpush1.bf16.msra.mxu0 %v790
    %1404 = vmatprep.subr.bf16.mxu0 0
    %1405 = vmatpush1.bf16.msra.mxu0 %v787
    %1406 = vmatprep.subr.bf16.mxu0 0
    %1407 = vmatpush1.bf16.msra.mxu0 %v784
    %1408 = vmatprep.subr.bf16.mxu0 0
    %1409 = vmatpush2.bf16.msra.mxu0 0
    %1410 = vmatprep.subr.bf16.mxu0 0
    %1411 = vmatpush2.bf16.msra.mxu0 0
    %1412 = vmatprep.subr.bf16.mxu0 0
    %1413 = vmatpush2.bf16.msra.mxu0 0
    %1414 = vmatprep.subr.bf16.mxu0 0
    %1415 = vmatpush2.bf16.msra.mxu0 0
    %1416 = vmatprep.subr.bf16.mxu0 0
    %1417 = vmatpush2.bf16.msra.mxu0 0
    %1418 = vmatprep.subr.bf16.mxu0 0
    %1419 = vmatpush2.bf16.msra.mxu0 0
    %1420 = vmatprep.subr.bf16.mxu0 0
    %1421 = vmatpush2.bf16.msra.mxu0 0
    %1422 = vmatprep.subr.bf16.mxu0 0
    %1423 = vmatpush2.bf16.msra.mxu0 0
    %1424 = vmatprep.mubr.bf16.mxu0 0
    %1425 = vmatmul.mubr.bf16.gmra.mxu0 %v1350
    %v1426 = vpop.f32.mrf.mxu0
    %v1427 = vadd.f32 0.0, %v1426
    %v1428 = vpop.f32.mrf.mxu0
    %v1429 = vpop.f32.mrf.mxu0
    %v1430 = vpop.f32.mrf.mxu0
    %1431 = vdwg.mxu0
    %v1432 = vadd.f32 %v590, %v1386
    %v1433 = vxor.u32 %v1432, 2147483648
    %v1434 = vmul.f32 %v1433, 1.442695
    %v1435 = vpow.pop %v1434
    %v1436 = vadd.f32 %v1435, 1.0
    %v1437 = vrcp.pop %v1436
    %v1438 = vmul.f32 1.0, %v1437
    %v1439 = vadd.f32 %v592, %v1388
    %v1440 = vxor.u32 %v1439, 2147483648
    %v1441 = vmul.f32 %v1440, 1.442695
    %v1442 = vpow.pop %v1441
    %v1443 = vadd.f32 %v1442, 1.0
    %v1444 = vrcp.pop %v1443
    %v1445 = vmul.f32 1.0, %v1444
    %v1446 = vadd.f32 %v1427, %v929
    %v1447 = vmul.f32 %v1438, %v1446
    %v1448 = vadd.f32 %v658, %v1447
    %v1449 = vtanh.pop %v1448
    %v1450 = vsub.f32 %v1349, %v1449
    %v1451 = vmul.f32 %v1445, %v1450
    %v1452 = vadd.f32 %v1449, %v1451
    %v1453 = vpack.c.bf16 %v1452, %v1452
    %1454 = vmatprep.subr.bf16.mxu0 %v804
    %1455 = vmatpush1.bf16.msra.mxu0 %v803
    %1456 = vmatprep.subr.bf16.mxu0 %v801
    %1457 = vmatpush1.bf16.msra.mxu0 %v800
    %1458 = vmatprep.subr.bf16.mxu0 %v798
    %1459 = vmatpush1.bf16.msra.mxu0 %v797
    %1460 = vmatprep.subr.bf16.mxu0 %v795
    %1461 = vmatpush1.bf16.msra.mxu0 %v794
    %1462 = vmatprep.subr.bf16.mxu0 %v792
    %1463 = vmatpush1.bf16.msra.mxu0 %v791
    %1464 = vmatprep.subr.bf16.mxu0 %v789
    %1465 = vmatpush1.bf16.msra.mxu0 %v788
    %1466 = vmatprep.subr.bf16.mxu0 %v786
    %1467 = vmatpush1.bf16.msra.mxu0 %v785
    %1468 = vmatprep.subr.bf16.mxu0 %v783
    %1469 = vmatpush1.bf16.msra.mxu0 %v782
    %1470 = vmatprep.subr.bf16.mxu0 0
    %1471 = vmatpush2.bf16.msra.mxu0 0
    %1472 = vmatprep.subr.bf16.mxu0 0
    %1473 = vmatpush2.bf16.msra.mxu0 0
    %1474 = vmatprep.subr.bf16.mxu0 0
    %1475 = vmatpush2.bf16.msra.mxu0 0
    %1476 = vmatprep.subr.bf16.mxu0 0
    %1477 = vmatpush2.bf16.msra.mxu0 0
    %1478 = vmatprep.subr.bf16.mxu0 0
    %1479 = vmatpush2.bf16.msra.mxu0 0
    %1480 = vmatprep.subr.bf16.mxu0 0
    %1481 = vmatpush2.bf16.msra.mxu0 0
    %1482 = vmatprep.subr.bf16.mxu0 0
    %1483 = vmatpush2.bf16.msra.mxu0 0
    %1484 = vmatprep.subr.bf16.mxu0 0
    %1485 = vmatpush2.bf16.msra.mxu0 0
    %1486 = vmatprep.mubr.bf16.mxu0 0
    %1487 = vmatmul.mubr.bf16.gmra.mxu0 %v1453
    %v1488 = vpop.f32.mrf.mxu0
    %v1489 = vadd.f32 0.0, %v1488
    %v1490 = vpop.f32.mrf.mxu0
    %v1491 = vadd.f32 0.0, %v1490
    %v1492 = vpop.f32.mrf.mxu0
    %v1493 = vpop.f32.mrf.mxu0
    %1494 = vdwg.mxu0
    %1495 = vmatprep.subr.bf16.mxu0 0
    %1496 = vmatpush1.bf16.msra.mxu0 %v805
    %1497 = vmatprep.subr.bf16.mxu0 0
    %1498 = vmatpush1.bf16.msra.mxu0 %v802
    %1499 = vmatprep.subr.bf16.mxu0 0
    %1500 = vmatpush1.bf16.msra.mxu0 %v799
    %1501 = vmatprep.subr.bf16.mxu0 0
    %1502 = vmatpush1.bf16.msra.mxu0 %v796
    %1503 = vmatprep.subr.bf16.mxu0 0
    %1504 = vmatpush1.bf16.msra.mxu0 %v793
    %1505 = vmatprep.subr.bf16.mxu0 0
    %1506 = vmatpush1.bf16.msra.mxu0 %v790
    %1507 = vmatprep.subr.bf16.mxu0 0
    %1508 = vmatpush1.bf16.msra.mxu0 %v787
    %1509 = vmatprep.subr.bf16.mxu0 0
    %1510 = vmatpush1.bf16.msra.mxu0 %v784
    %1511 = vmatprep.subr.bf16.mxu0 0
    %1512 = vmatpush2.bf16.msra.mxu0 0
    %1513 = vmatprep.subr.bf16.mxu0 0
    %1514 = vmatpush2.bf16.msra.mxu0 0
    %1515 = vmatprep.subr.bf16.mxu0 0
    %1516 = vmatpush2.bf16.msra.mxu0 0
    %1517 = vmatprep.subr.bf16.mxu0 0
    %1518 = vmatpush2.bf16.msra.mxu0 0
    %1519 = vmatprep.subr.bf16.mxu0 0
    %1520 = vmatpush2.bf16.msra.mxu0 0
    %1521 = vmatprep.subr.bf16.mxu0 0
    %1522 = vmatpush2.bf16.msra.mxu0 0
    %1523 = vmatprep.subr.bf16.mxu0 0
    %1524 = vmatpush2.bf16.msra.mxu0 0
    %1525 = vmatprep.subr.bf16.mxu0 0
    %1526 = vmatpush2.bf16.msra.mxu0 0
    %1527 = vmatprep.mubr.bf16.mxu0 0
    %1528 = vmatmul.mubr.bf16.gmra.mxu0 %v1453
    %v1529 = vpop.f32.mrf.mxu0
    %v1530 = vadd.f32 0.0, %v1529
    %v1531 = vpop.f32.mrf.mxu0
    %v1532 = vpop.f32.mrf.mxu0
    %v1533 = vpop.f32.mrf.mxu0
    %1534 = vdwg.mxu0
    %v1535 = vadd.f32 %v596, %v1489
    %v1536 = vxor.u32 %v1535, 2147483648
    %v1537 = vmul.f32 %v1536, 1.442695
    %v1538 = vpow.pop %v1537
    %v1539 = vadd.f32 %v1538, 1.0
    %v1540 = vrcp.pop %v1539
    %v1541 = vmul.f32 1.0, %v1540
    %v1542 = vadd.f32 %v598, %v1491
    %v1543 = vxor.u32 %v1542, 2147483648
    %v1544 = vmul.f32 %v1543, 1.442695
    %v1545 = vpow.pop %v1544
    %v1546 = vadd.f32 %v1545, 1.0
    %v1547 = vrcp.pop %v1546
    %v1548 = vmul.f32 1.0, %v1547
    %v1549 = vadd.f32 %v1530, %v929
    %v1550 = vmul.f32 %v1541, %v1549
    %v1551 = vadd.f32 %v663, %v1550
    %v1552 = vtanh.pop %v1551
    %v1553 = vsub.f32 %v1452, %v1552
    %v1554 = vmul.f32 %v1548, %v1553
    %v1555 = vadd.f32 %v1552, %v1554
    %v1556 = vpack.c.bf16 %v1555, %v1555
    %1557 = vmatprep.subr.bf16.mxu0 %v804
    %1558 = vmatpush1.bf16.msra.mxu0 %v803
    %1559 = vmatprep.subr.bf16.mxu0 %v801
    %1560 = vmatpush1.bf16.msra.mxu0 %v800
    %1561 = vmatprep.subr.bf16.mxu0 %v798
    %1562 = vmatpush1.bf16.msra.mxu0 %v797
    %1563 = vmatprep.subr.bf16.mxu0 %v795
    %1564 = vmatpush1.bf16.msra.mxu0 %v794
    %1565 = vmatprep.subr.bf16.mxu0 %v792
    %1566 = vmatpush1.bf16.msra.mxu0 %v791
    %1567 = vmatprep.subr.bf16.mxu0 %v789
    %1568 = vmatpush1.bf16.msra.mxu0 %v788
    %1569 = vmatprep.subr.bf16.mxu0 %v786
    %1570 = vmatpush1.bf16.msra.mxu0 %v785
    %1571 = vmatprep.subr.bf16.mxu0 %v783
    %1572 = vmatpush1.bf16.msra.mxu0 %v782
    %1573 = vmatprep.subr.bf16.mxu0 0
    %1574 = vmatpush2.bf16.msra.mxu0 0
    %1575 = vmatprep.subr.bf16.mxu0 0
    %1576 = vmatpush2.bf16.msra.mxu0 0
    %1577 = vmatprep.subr.bf16.mxu0 0
    %1578 = vmatpush2.bf16.msra.mxu0 0
    %1579 = vmatprep.subr.bf16.mxu0 0
    %1580 = vmatpush2.bf16.msra.mxu0 0
    %1581 = vmatprep.subr.bf16.mxu0 0
    %1582 = vmatpush2.bf16.msra.mxu0 0
    %1583 = vmatprep.subr.bf16.mxu0 0
    %1584 = vmatpush2.bf16.msra.mxu0 0
    %1585 = vmatprep.subr.bf16.mxu0 0
    %1586 = vmatpush2.bf16.msra.mxu0 0
    %1587 = vmatprep.subr.bf16.mxu0 0
    %1588 = vmatpush2.bf16.msra.mxu0 0
    %1589 = vmatprep.mubr.bf16.mxu0 0
    %1590 = vmatmul.mubr.bf16.gmra.mxu0 %v1556
    %v1591 = vpop.f32.mrf.mxu0
    %v1592 = vadd.f32 0.0, %v1591
    %v1593 = vpop.f32.mrf.mxu0
    %v1594 = vadd.f32 0.0, %v1593
    %v1595 = vpop.f32.mrf.mxu0
    %v1596 = vpop.f32.mrf.mxu0
    %1597 = vdwg.mxu0
    %1598 = vmatprep.subr.bf16.mxu0 0
    %1599 = vmatpush1.bf16.msra.mxu0 %v805
    %1600 = vmatprep.subr.bf16.mxu0 0
    %1601 = vmatpush1.bf16.msra.mxu0 %v802
    %1602 = vmatprep.subr.bf16.mxu0 0
    %1603 = vmatpush1.bf16.msra.mxu0 %v799
    %1604 = vmatprep.subr.bf16.mxu0 0
    %1605 = vmatpush1.bf16.msra.mxu0 %v796
    %1606 = vmatprep.subr.bf16.mxu0 0
    %1607 = vmatpush1.bf16.msra.mxu0 %v793
    %1608 = vmatprep.subr.bf16.mxu0 0
    %1609 = vmatpush1.bf16.msra.mxu0 %v790
    %1610 = vmatprep.subr.bf16.mxu0 0
    %1611 = vmatpush1.bf16.msra.mxu0 %v787
    %1612 = vmatprep.subr.bf16.mxu0 0
    %1613 = vmatpush1.bf16.msra.mxu0 %v784
    %1614 = vmatprep.subr.bf16.mxu0 0
    %1615 = vmatpush2.bf16.msra.mxu0 0
    %1616 = vmatprep.subr.bf16.mxu0 0
    %1617 = vmatpush2.bf16.msra.mxu0 0
    %1618 = vmatprep.subr.bf16.mxu0 0
    %1619 = vmatpush2.bf16.msra.mxu0 0
    %1620 = vmatprep.subr.bf16.mxu0 0
    %1621 = vmatpush2.bf16.msra.mxu0 0
    %1622 = vmatprep.subr.bf16.mxu0 0
    %1623 = vmatpush2.bf16.msra.mxu0 0
    %1624 = vmatprep.subr.bf16.mxu0 0
    %1625 = vmatpush2.bf16.msra.mxu0 0
    %1626 = vmatprep.subr.bf16.mxu0 0
    %1627 = vmatpush2.bf16.msra.mxu0 0
    %1628 = vmatprep.subr.bf16.mxu0 0
    %1629 = vmatpush2.bf16.msra.mxu0 0
    %1630 = vmatprep.mubr.bf16.mxu0 0
    %1631 = vmatmul.mubr.bf16.gmra.mxu0 %v1556
    %v1632 = vpop.f32.mrf.mxu0
    %v1633 = vadd.f32 0.0, %v1632
    %v1634 = vpop.f32.mrf.mxu0
    %v1635 = vpop.f32.mrf.mxu0
    %v1636 = vpop.f32.mrf.mxu0
    %1637 = vdwg.mxu0
    %v1638 = vadd.f32 %v600, %v1592
    %v1639 = vxor.u32 %v1638, 2147483648
    %v1640 = vmul.f32 %v1639, 1.442695
    %v1641 = vpow.pop %v1640
    %v1642 = vadd.f32 %v1641, 1.0
    %v1643 = vrcp.pop %v1642
    %v1644 = vmul.f32 1.0, %v1643
    %v1645 = vadd.f32 %v602, %v1594
    %v1646 = vxor.u32 %v1645, 2147483648
    %v1647 = vmul.f32 %v1646, 1.442695
    %v1648 = vpow.pop %v1647
    %v1649 = vadd.f32 %v1648, 1.0
    %v1650 = vrcp.pop %v1649
    %v1651 = vmul.f32 1.0, %v1650
    %v1652 = vadd.f32 %v1633, %v929
    %v1653 = vmul.f32 %v1644, %v1652
    %v1654 = vadd.f32 %v666, %v1653
    %v1655 = vtanh.pop %v1654
    %v1656 = vsub.f32 %v1555, %v1655
    %v1657 = vmul.f32 %v1651, %v1656
    %v1658 = vadd.f32 %v1655, %v1657
    %v1659 = vld [vmem:[%s6] sm:$0x1]
    %v1661 = vlaneseq
    %v1662 = vshrl.u32 %v1661, 7
    %v1663 = vsub.s32 0, %v1662
    %v1664 = vrot.slane %v1659, %v1663
    %v1666 = vmul.f32 %v1658, %v1664
    %1667 = vadd.xlane.f32.xlu0 %v1666
    %v1668 = vpop.xlane.xlu0 %1667
    %v1669 = vld [vmem:[#allocation3] sm:$0x1]
    %v1671 = vlaneseq
    %v1672 = vshrl.u32 %v1671, 7
    %v1673 = vsub.s32 0, %v1672
    %v1674 = vrot.slane %v1669, %v1673
    %v1676 = vadd.f32 %v1668, %v1674
    %v1677 = vxor.u32 %v1676, 2147483648
    %v1678 = vmul.f32 %v1677, 1.442695
    %v1679 = vpow.pop %v1678
    %v1680 = vadd.f32 %v1679, 1.0
    %v1681 = vrcp.pop %v1680
    %v1682 = vmul.f32 1.0, %v1681
    %vm1683 = vcmask 7168
    %1684 = vst.msk [vmem:[%s8] sm:$0xff] %vm1683, %v1682
    // Predicated region
    $region50: #{tpu_custom_call.1} parent=1 // pred_check
      _
    $region51: #{tpu_custom_call.1} parent=1 // pred_check_branch
      %1686 = sbr.rel (0) target = $region53
    $region52: #{tpu_custom_call.1} parent=1 // pred_region
      _
    $region53: #{tpu_custom_call.1} parent=1 // pred_fallthru
      _
    // Predicated region
    $region54: #{tpu_custom_call.1} parent=1 // pred_check
      _
    $region55: #{tpu_custom_call.1} parent=1 // pred_check_branch
      %1688 = sbr.rel (0) target = $region57
    $region56: #{tpu_custom_call.1} parent=1 // pred_region
      _
    $region57: #{tpu_custom_call.1} parent=1 // pred_fallthru
      _
    %1689 = vsyncpa [#allocation5], 1
    %1690 = vsyncpa [#allocation9], 1
    %1691 = vsyncpa [#allocation6], 1

</llo_original>
